<compile_context>
chip_gen: v7x
topology: tpu7x:2x2x1
jax: 0.10.0
libtpu: 0.0.40
codegen_flags: <defaults>
</compile_context>

<pallas_src>
import functools

import jax
import jax.numpy as jnp
from jax import lax
from jax.experimental import pallas as pl
from jax.experimental.pallas import tpu as pltpu

_PADL = 128  # lane zero-padding on each side of the flat image (128-aligned)


def _conv3x3_flat(x, w_mat, bias, mask_l, mask_r, *, width, fuse):
    """3x3 'same' conv on a channel-major flat image.

    x      : (C, HW)       activations, spatial flattened on lanes
    w_mat  : (Cout, 9*C)   weights, column order (kh*3 + kw)*C + ci
    bias   : (Cout, 1)
    mask_l : (1, HW)       1.0 where w > 0        (valid source for dw = -1)
    mask_r : (1, HW)       1.0 where w < width-1  (valid source for dw = +1)
    """
    C, HW = x.shape
    cout = w_mat.shape[0]
    zeros = jnp.zeros((C, _PADL), jnp.float32)
    # aligned lane concat (all chunks multiples of 128): zero-fill margins
    xpad = jnp.concatenate([zeros, x, zeros], axis=1)        # (C, HW + 256)

    taps = []
    for dh in (-1, 0, 1):
        for dw in (-1, 0, 1):
            s = dh * width + dw
            tap = xpad[:, _PADL + s:_PADL + s + HW]          # x[:, q+s], 0 if OOB rows
            if dw == -1:
                tap = tap * mask_l                           # kill wrap at w = 0
            elif dw == 1:
                tap = tap * mask_r                           # kill wrap at w = W-1
            taps.append(tap)

    if fuse:
        # im2col: one wide-contraction MXU matmul (Cout, 9C) @ (9C, HW)
        patches = jnp.concatenate(taps, axis=0)              # aligned: C % 8 == 0
        y = jnp.dot(w_mat, patches, preferred_element_type=jnp.float32)
    else:
        # Cin not sublane-tile aligned: accumulate 9 small matmuls instead
        y = jnp.zeros((cout, HW), jnp.float32)
        for t, tap in enumerate(taps):
            y = y + jnp.dot(w_mat[:, t * C:(t + 1) * C], tap,
                            preferred_element_type=jnp.float32)
    return y + bias                                          # bias added once


def head_kernel(x_ref, colmask_ref, w1_ref, b1_ref, gmat_ref, gamma_ref,
                beta_ref, w2_ref, b2_ref, out_ref, *, width, eps, fuse1, fuse2):
    cm = colmask_ref[...]                      # (2, HW)
    mask_l = cm[0:1, :]
    mask_r = cm[1:2, :]

    x = x_ref[0]                               # (Cin, HW)

    # ---- conv1: Conv2d(c_in -> c_lgan, k=3, padding=1) ----
    y1 = _conv3x3_flat(x, w1_ref[...], b1_ref[...], mask_l, mask_r,
                       width=width, fuse=fuse1)

    # ---- GroupNorm(4, eps), biased variance, per-group stats via matmul ----
    gm = gmat_ref[...]                         # (Cl, Cl), 1/(g*HW) within group
    mean = jnp.sum(jnp.dot(gm, y1, preferred_element_type=jnp.float32),
                   axis=1, keepdims=True)      # (Cl, 1)
    m2 = jnp.sum(jnp.dot(gm, y1 * y1, preferred_element_type=jnp.float32),
                 axis=1, keepdims=True)        # (Cl, 1)
    var = jnp.maximum(m2 - mean * mean, 0.0)   # clamp E[x^2]-E[x]^2 >= 0
    scale = lax.rsqrt(var + eps) * gamma_ref[...]
    yn = (y1 - mean) * scale + beta_ref[...]

    # ---- SiLU ----
    ya = yn * pl.reciprocal(1.0 + jnp.exp(-yn), approx=False)

    # ---- conv2: Conv2d(c_lgan -> c_lgan, k=3, padding=1), fused im2col ----
    y2 = _conv3x3_flat(ya, w2_ref[...], b2_ref[...], mask_l, mask_r,
                       width=width, fuse=fuse2)

    out_ref[0] = y2.astype(out_ref.dtype)      # lane-dense (Cl, HW) store


def head_forward(x_nchw, params, eps=1e-6):
    w1, b1, gamma, beta, w2, b2 = params
    N, c_in, H, W = x_nchw.shape
    c_lgan = w1.shape[0]
    HW = H * W
    g = c_lgan // 4

    # free metadata reshape; no HBM pad / transpose in the wrapper
    x_flat = x_nchw.reshape(N, c_in, HW)

    # conv weights as im2col matrices, column order (kh*3 + kw)*Cin + ci
    w1_mat = jnp.transpose(w1, (0, 2, 3, 1)).reshape(c_lgan, 9 * c_in)
    w2_mat = jnp.transpose(w2, (0, 2, 3, 1)).reshape(c_lgan, 9 * c_lgan)
    b1c = b1.reshape(c_lgan, 1)
    b2c = b2.reshape(c_lgan, 1)
    gammac = gamma.reshape(c_lgan, 1)
    betac = beta.reshape(c_lgan, 1)

    # group-averaging matrix (contiguous groups of size g), scaled by 1/(g*HW)
    ch = jnp.arange(c_lgan)
    gmat = (ch[:, None] // g == ch[None, :] // g).astype(jnp.float32) / (g * HW)

    # column-edge validity masks for the +/-1 horizontal taps
    col = jnp.arange(HW) % W
    colmask = jnp.stack([(col > 0), (col < W - 1)]).astype(jnp.float32)  # (2, HW)

    fuse1 = (c_in % 8 == 0)
    fuse2 = (c_lgan % 8 == 0)

    kern = functools.partial(head_kernel, width=W, eps=eps,
                             fuse1=fuse1, fuse2=fuse2)
    out = pl.pallas_call(
        kern,
        out_shape=jax.ShapeDtypeStruct((N, c_lgan, HW), jnp.float32),
        grid_spec=pltpu.PrefetchScalarGridSpec(
            num_scalar_prefetch=0,
            grid=(N,),
            in_specs=[
                pl.BlockSpec((1, c_in, HW), lambda n: (n, 0, 0)),
                pl.BlockSpec((2, HW), lambda n: (0, 0)),
                pl.BlockSpec((c_lgan, 9 * c_in), lambda n: (0, 0)),
                pl.BlockSpec((c_lgan, 1), lambda n: (0, 0)),
                pl.BlockSpec((c_lgan, c_lgan), lambda n: (0, 0)),
                pl.BlockSpec((c_lgan, 1), lambda n: (0, 0)),
                pl.BlockSpec((c_lgan, 1), lambda n: (0, 0)),
                pl.BlockSpec((c_lgan, 9 * c_lgan), lambda n: (0, 0)),
                pl.BlockSpec((c_lgan, 1), lambda n: (0, 0)),
            ],
            out_specs=pl.BlockSpec((1, c_lgan, HW), lambda n: (n, 0, 0)),
        ),
        compiler_params=pltpu.CompilerParams(
            dimension_semantics=("parallel",)),   # batch elems independent (v7x)
    )(x_flat, colmask, w1_mat, b1c, gmat, gammac, betac, w2_mat, b2c)

    return out.reshape(N, c_lgan, H, W)


def head_reference(x, params, eps=1e-6):
    w1, b1, gamma, beta, w2, b2 = params
    N, c_in, H, W = x.shape
    c_lgan = w1.shape[0]
    g = c_lgan // 4

    y = lax.conv_general_dilated(
        x, w1, window_strides=(1, 1), padding="SAME",
        dimension_numbers=("NCHW", "OIHW", "NCHW")) + b1.reshape(1, c_lgan, 1, 1)
    yr = y.reshape(N, 4, g, H, W)
    mean = yr.mean(axis=(2, 3, 4), keepdims=True)
    var = yr.var(axis=(2, 3, 4), keepdims=True)
    yn = ((yr - mean) / jnp.sqrt(var + eps)).reshape(N, c_lgan, H, W)
    yn = yn * gamma.reshape(1, c_lgan, 1, 1) + beta.reshape(1, c_lgan, 1, 1)
    ya = yn * jax.nn.sigmoid(yn)
    z = lax.conv_general_dilated(
        ya, w2, window_strides=(1, 1), padding="SAME",
        dimension_numbers=("NCHW", "OIHW", "NCHW")) + b2.reshape(1, c_lgan, 1, 1)
    return z


if __name__ == "__main__":
    # Head(c_lgan=8, c_in=4, down_sample unused in forward); NCHW input
    N, c_in, c_lgan, H, W = 2, 4, 8, 16, 16

    key = jax.random.PRNGKey(0)
    kx, k1, k2, k3, k4, k5, k6 = jax.random.split(key, 7)

    x = jax.random.normal(kx, (N, c_in, H, W), jnp.float32)
    w1 = jax.random.normal(k1, (c_lgan, c_in, 3, 3), jnp.float32) * 0.1
    b1 = jax.random.normal(k2, (c_lgan,), jnp.float32) * 0.1
    gamma = 1.0 + jax.random.normal(k3, (c_lgan,), jnp.float32) * 0.1
    beta = jax.random.normal(k4, (c_lgan,), jnp.float32) * 0.1
    w2 = jax.random.normal(k5, (c_lgan, c_lgan, 3, 3), jnp.float32) * 0.1
    b2 = jax.random.normal(k6, (c_lgan,), jnp.float32) * 0.1
    params = (w1, b1, gamma, beta, w2, b2)

    out = head_forward(x, params)
    out = jax.block_until_ready(out)

    ref = head_reference(x, params)
    assert out.shape == (N, c_lgan, H, W), out.shape
    max_err = float(jnp.max(jnp.abs(out - ref)))
    assert jnp.allclose(out, ref, atol=1e-4, rtol=1e-4), max_err

    print("KERNEL_OK")
</pallas_src>

<mosaic_0001>
module attributes {stable_mosaic.version = 11 : i64} {
  func.func @head_kernel(%arg0: i32, %arg1: memref<1x4x256xf32, #tpu.memory_space<vmem>>, %arg2: memref<2x256xf32, #tpu.memory_space<vmem>>, %arg3: memref<8x36xf32, #tpu.memory_space<vmem>>, %arg4: memref<8x1xf32, #tpu.memory_space<vmem>>, %arg5: memref<8x8xf32, #tpu.memory_space<vmem>>, %arg6: memref<8x1xf32, #tpu.memory_space<vmem>>, %arg7: memref<8x1xf32, #tpu.memory_space<vmem>>, %arg8: memref<8x72xf32, #tpu.memory_space<vmem>>, %arg9: memref<8x1xf32, #tpu.memory_space<vmem>>, %arg10: memref<1x8x256xf32, #tpu.memory_space<vmem>>) attributes {dimension_semantics = [#tpu.dimension_semantics<parallel>], iteration_bounds = array<i64: 2>, scalar_prefetch = 0 : i64, scratch_operands = 0 : i64, tpu.core_type = #tpu.core_type<tc>, window_params = [{transform_indices = @transform_0, window_bounds = array<i64: 1, 4, 256>}, {pipeline_mode = #tpu.pipeline_mode<synchronous>, transform_indices = @transform_1, window_bounds = array<i64: 2, 256>}, {pipeline_mode = #tpu.pipeline_mode<synchronous>, transform_indices = @transform_2, window_bounds = array<i64: 8, 36>}, {pipeline_mode = #tpu.pipeline_mode<synchronous>, transform_indices = @transform_3, window_bounds = array<i64: 8, 1>}, {pipeline_mode = #tpu.pipeline_mode<synchronous>, transform_indices = @transform_4, window_bounds = array<i64: 8, 8>}, {pipeline_mode = #tpu.pipeline_mode<synchronous>, transform_indices = @transform_5, window_bounds = array<i64: 8, 1>}, {pipeline_mode = #tpu.pipeline_mode<synchronous>, transform_indices = @transform_6, window_bounds = array<i64: 8, 1>}, {pipeline_mode = #tpu.pipeline_mode<synchronous>, transform_indices = @transform_7, window_bounds = array<i64: 8, 72>}, {pipeline_mode = #tpu.pipeline_mode<synchronous>, transform_indices = @transform_8, window_bounds = array<i64: 8, 1>}, {transform_indices = @transform_9, window_bounds = array<i64: 1, 8, 256>}]} {
    %c0 = arith.constant 0 : index
    %c0_0 = arith.constant 0 : index
    %0 = vector.load %arg2[%c0, %c0_0] : memref<2x256xf32, #tpu.memory_space<vmem>>, vector<2x256xf32>
    %1 = vector.extract_strided_slice %0 {offsets = [0, 0], sizes = [1, 256], strides = [1, 1]} : vector<2x256xf32> to vector<1x256xf32>
    %2 = vector.extract_strided_slice %0 {offsets = [1, 0], sizes = [1, 256], strides = [1, 1]} : vector<2x256xf32> to vector<1x256xf32>
    %c0_1 = arith.constant 0 : index
    %c0_2 = arith.constant 0 : index
    %c0_3 = arith.constant 0 : index
    %3 = vector.load %arg1[%c0_1, %c0_2, %c0_3] : memref<1x4x256xf32, #tpu.memory_space<vmem>>, vector<1x4x256xf32>
    %4 = vector.shape_cast %3 : vector<1x4x256xf32> to vector<4x256xf32>
    %c0_4 = arith.constant 0 : index
    %c0_5 = arith.constant 0 : index
    %5 = vector.load %arg3[%c0_4, %c0_5] : memref<8x36xf32, #tpu.memory_space<vmem>>, vector<8x36xf32>
    %c0_6 = arith.constant 0 : index
    %c0_7 = arith.constant 0 : index
    %6 = vector.load %arg4[%c0_6, %c0_7] : memref<8x1xf32, #tpu.memory_space<vmem>>, vector<8x1xf32>
    %cst = arith.constant 0.000000e+00 : f32
    %7 = vector.broadcast %cst : f32 to vector<4x128xf32>
    %8 = tpu.concatenate %7, %4, %7 in 1 : vector<4x128xf32>, vector<4x256xf32>, vector<4x128xf32> -> vector<4x512xf32>
    %9 = vector.extract_strided_slice %8 {offsets = [0, 111], sizes = [4, 256], strides = [1, 1]} : vector<4x512xf32> to vector<4x256xf32>
    %10 = vector.broadcast %1 : vector<1x256xf32> to vector<4x256xf32>
    %11 = arith.mulf %9, %10 : vector<4x256xf32>
    %12 = vector.extract_strided_slice %8 {offsets = [0, 112], sizes = [4, 256], strides = [1, 1]} : vector<4x512xf32> to vector<4x256xf32>
    %13 = vector.extract_strided_slice %8 {offsets = [0, 113], sizes = [4, 256], strides = [1, 1]} : vector<4x512xf32> to vector<4x256xf32>
    %14 = vector.broadcast %2 : vector<1x256xf32> to vector<4x256xf32>
    %15 = arith.mulf %13, %14 : vector<4x256xf32>
    %16 = vector.extract_strided_slice %8 {offsets = [0, 127], sizes = [4, 256], strides = [1, 1]} : vector<4x512xf32> to vector<4x256xf32>
    %17 = vector.broadcast %1 : vector<1x256xf32> to vector<4x256xf32>
    %18 = arith.mulf %16, %17 : vector<4x256xf32>
    %19 = vector.extract_strided_slice %8 {offsets = [0, 128], sizes = [4, 256], strides = [1, 1]} : vector<4x512xf32> to vector<4x256xf32>
    %20 = vector.extract_strided_slice %8 {offsets = [0, 129], sizes = [4, 256], strides = [1, 1]} : vector<4x512xf32> to vector<4x256xf32>
    %21 = vector.broadcast %2 : vector<1x256xf32> to vector<4x256xf32>
    %22 = arith.mulf %20, %21 : vector<4x256xf32>
    %23 = vector.extract_strided_slice %8 {offsets = [0, 143], sizes = [4, 256], strides = [1, 1]} : vector<4x512xf32> to vector<4x256xf32>
    %24 = vector.broadcast %1 : vector<1x256xf32> to vector<4x256xf32>
    %25 = arith.mulf %23, %24 : vector<4x256xf32>
    %26 = vector.extract_strided_slice %8 {offsets = [0, 144], sizes = [4, 256], strides = [1, 1]} : vector<4x512xf32> to vector<4x256xf32>
    %27 = vector.extract_strided_slice %8 {offsets = [0, 145], sizes = [4, 256], strides = [1, 1]} : vector<4x512xf32> to vector<4x256xf32>
    %28 = vector.broadcast %2 : vector<1x256xf32> to vector<4x256xf32>
    %29 = arith.mulf %27, %28 : vector<4x256xf32>
    %cst_8 = arith.constant 0.000000e+00 : f32
    %30 = vector.broadcast %cst_8 : f32 to vector<8x256xf32>
    %31 = vector.extract_strided_slice %5 {offsets = [0, 0], sizes = [8, 4], strides = [1, 1]} : vector<8x36xf32> to vector<8x4xf32>
    %cst_9 = arith.constant dense<0.000000e+00> : vector<8x256xf32>
    %32 = tpu.matmul %31, %11, %cst_9 {dimension_numbers = #tpu.dot_dimension_numbers<[1], [0], [0], [1], [0, 0, 1, 1], [], []>} : vector<8x4xf32>, vector<4x256xf32>, vector<8x256xf32> -> vector<8x256xf32>
    %33 = arith.addf %30, %32 : vector<8x256xf32>
    %34 = vector.extract_strided_slice %5 {offsets = [0, 4], sizes = [8, 4], strides = [1, 1]} : vector<8x36xf32> to vector<8x4xf32>
    %cst_10 = arith.constant dense<0.000000e+00> : vector<8x256xf32>
    %35 = tpu.matmul %34, %12, %cst_10 {dimension_numbers = #tpu.dot_dimension_numbers<[1], [0], [0], [1], [0, 0, 1, 1], [], []>} : vector<8x4xf32>, vector<4x256xf32>, vector<8x256xf32> -> vector<8x256xf32>
    %36 = arith.addf %33, %35 : vector<8x256xf32>
    %37 = vector.extract_strided_slice %5 {offsets = [0, 8], sizes = [8, 4], strides = [1, 1]} : vector<8x36xf32> to vector<8x4xf32>
    %cst_11 = arith.constant dense<0.000000e+00> : vector<8x256xf32>
    %38 = tpu.matmul %37, %15, %cst_11 {dimension_numbers = #tpu.dot_dimension_numbers<[1], [0], [0], [1], [0, 0, 1, 1], [], []>} : vector<8x4xf32>, vector<4x256xf32>, vector<8x256xf32> -> vector<8x256xf32>
    %39 = arith.addf %36, %38 : vector<8x256xf32>
    %40 = vector.extract_strided_slice %5 {offsets = [0, 12], sizes = [8, 4], strides = [1, 1]} : vector<8x36xf32> to vector<8x4xf32>
    %cst_12 = arith.constant dense<0.000000e+00> : vector<8x256xf32>
    %41 = tpu.matmul %40, %18, %cst_12 {dimension_numbers = #tpu.dot_dimension_numbers<[1], [0], [0], [1], [0, 0, 1, 1], [], []>} : vector<8x4xf32>, vector<4x256xf32>, vector<8x256xf32> -> vector<8x256xf32>
    %42 = arith.addf %39, %41 : vector<8x256xf32>
    %43 = vector.extract_strided_slice %5 {offsets = [0, 16], sizes = [8, 4], strides = [1, 1]} : vector<8x36xf32> to vector<8x4xf32>
    %cst_13 = arith.constant dense<0.000000e+00> : vector<8x256xf32>
    %44 = tpu.matmul %43, %19, %cst_13 {dimension_numbers = #tpu.dot_dimension_numbers<[1], [0], [0], [1], [0, 0, 1, 1], [], []>} : vector<8x4xf32>, vector<4x256xf32>, vector<8x256xf32> -> vector<8x256xf32>
    %45 = arith.addf %42, %44 : vector<8x256xf32>
    %46 = vector.extract_strided_slice %5 {offsets = [0, 20], sizes = [8, 4], strides = [1, 1]} : vector<8x36xf32> to vector<8x4xf32>
    %cst_14 = arith.constant dense<0.000000e+00> : vector<8x256xf32>
    %47 = tpu.matmul %46, %22, %cst_14 {dimension_numbers = #tpu.dot_dimension_numbers<[1], [0], [0], [1], [0, 0, 1, 1], [], []>} : vector<8x4xf32>, vector<4x256xf32>, vector<8x256xf32> -> vector<8x256xf32>
    %48 = arith.addf %45, %47 : vector<8x256xf32>
    %49 = vector.extract_strided_slice %5 {offsets = [0, 24], sizes = [8, 4], strides = [1, 1]} : vector<8x36xf32> to vector<8x4xf32>
    %cst_15 = arith.constant dense<0.000000e+00> : vector<8x256xf32>
    %50 = tpu.matmul %49, %25, %cst_15 {dimension_numbers = #tpu.dot_dimension_numbers<[1], [0], [0], [1], [0, 0, 1, 1], [], []>} : vector<8x4xf32>, vector<4x256xf32>, vector<8x256xf32> -> vector<8x256xf32>
    %51 = arith.addf %48, %50 : vector<8x256xf32>
    %52 = vector.extract_strided_slice %5 {offsets = [0, 28], sizes = [8, 4], strides = [1, 1]} : vector<8x36xf32> to vector<8x4xf32>
    %cst_16 = arith.constant dense<0.000000e+00> : vector<8x256xf32>
    %53 = tpu.matmul %52, %26, %cst_16 {dimension_numbers = #tpu.dot_dimension_numbers<[1], [0], [0], [1], [0, 0, 1, 1], [], []>} : vector<8x4xf32>, vector<4x256xf32>, vector<8x256xf32> -> vector<8x256xf32>
    %54 = arith.addf %51, %53 : vector<8x256xf32>
    %55 = vector.extract_strided_slice %5 {offsets = [0, 32], sizes = [8, 4], strides = [1, 1]} : vector<8x36xf32> to vector<8x4xf32>
    %cst_17 = arith.constant dense<0.000000e+00> : vector<8x256xf32>
    %56 = tpu.matmul %55, %29, %cst_17 {dimension_numbers = #tpu.dot_dimension_numbers<[1], [0], [0], [1], [0, 0, 1, 1], [], []>} : vector<8x4xf32>, vector<4x256xf32>, vector<8x256xf32> -> vector<8x256xf32>
    %57 = arith.addf %54, %56 : vector<8x256xf32>
    %58 = vector.broadcast %6 : vector<8x1xf32> to vector<8x256xf32>
    %59 = arith.addf %57, %58 : vector<8x256xf32>
    %c0_18 = arith.constant 0 : index
    %c0_19 = arith.constant 0 : index
    %60 = vector.load %arg5[%c0_18, %c0_19] : memref<8x8xf32, #tpu.memory_space<vmem>>, vector<8x8xf32>
    %cst_20 = arith.constant dense<0.000000e+00> : vector<8x256xf32>
    %61 = tpu.matmul %60, %59, %cst_20 {dimension_numbers = #tpu.dot_dimension_numbers<[1], [0], [0], [1], [0, 0, 1, 1], [], []>} : vector<8x8xf32>, vector<8x256xf32>, vector<8x256xf32> -> vector<8x256xf32>
    %cst_21 = arith.constant dense<0.000000e+00> : vector<8xf32>
    %62 = vector.multi_reduction <add>, %61, %cst_21 [1] : vector<8x256xf32> to vector<8xf32>
    %63 = vector.shape_cast %62 : vector<8xf32> to vector<8x1xf32>
    %64 = arith.mulf %59, %59 : vector<8x256xf32>
    %cst_22 = arith.constant dense<0.000000e+00> : vector<8x256xf32>
    %65 = tpu.matmul %60, %64, %cst_22 {dimension_numbers = #tpu.dot_dimension_numbers<[1], [0], [0], [1], [0, 0, 1, 1], [], []>} : vector<8x8xf32>, vector<8x256xf32>, vector<8x256xf32> -> vector<8x256xf32>
    %cst_23 = arith.constant dense<0.000000e+00> : vector<8xf32>
    %66 = vector.multi_reduction <add>, %65, %cst_23 [1] : vector<8x256xf32> to vector<8xf32>
    %67 = vector.shape_cast %66 : vector<8xf32> to vector<8x1xf32>
    %68 = arith.mulf %63, %63 : vector<8x1xf32>
    %69 = arith.subf %67, %68 : vector<8x1xf32>
    %cst_24 = arith.constant 0.000000e+00 : f32
    %70 = vector.broadcast %cst_24 : f32 to vector<8x1xf32>
    %71 = arith.maximumf %69, %70 : vector<8x1xf32>
    %cst_25 = arith.constant 9.99999997E-7 : f32
    %72 = vector.broadcast %cst_25 : f32 to vector<8x1xf32>
    %73 = arith.addf %71, %72 : vector<8x1xf32>
    %74 = math.rsqrt %73 : vector<8x1xf32>
    %c0_26 = arith.constant 0 : index
    %c0_27 = arith.constant 0 : index
    %75 = vector.load %arg6[%c0_26, %c0_27] : memref<8x1xf32, #tpu.memory_space<vmem>>, vector<8x1xf32>
    %76 = arith.mulf %74, %75 : vector<8x1xf32>
    %77 = vector.broadcast %63 : vector<8x1xf32> to vector<8x256xf32>
    %78 = arith.subf %59, %77 : vector<8x256xf32>
    %79 = vector.broadcast %76 : vector<8x1xf32> to vector<8x256xf32>
    %80 = arith.mulf %78, %79 : vector<8x256xf32>
    %c0_28 = arith.constant 0 : index
    %c0_29 = arith.constant 0 : index
    %81 = vector.load %arg7[%c0_28, %c0_29] : memref<8x1xf32, #tpu.memory_space<vmem>>, vector<8x1xf32>
    %82 = vector.broadcast %81 : vector<8x1xf32> to vector<8x256xf32>
    %83 = arith.addf %80, %82 : vector<8x256xf32>
    %cst_30 = arith.constant 0.000000e+00 : f32
    %84 = vector.broadcast %cst_30 : f32 to vector<8x256xf32>
    %85 = arith.subf %84, %83 : vector<8x256xf32>
    %86 = math.exp %85 : vector<8x256xf32>
    %cst_31 = arith.constant 1.000000e+00 : f32
    %87 = vector.broadcast %cst_31 : f32 to vector<8x256xf32>
    %88 = arith.addf %87, %86 : vector<8x256xf32>
    %89 = tpu.reciprocal %88 : vector<8x256xf32> -> vector<8x256xf32>
    %90 = arith.mulf %83, %89 : vector<8x256xf32>
    %c0_32 = arith.constant 0 : index
    %c0_33 = arith.constant 0 : index
    %91 = vector.load %arg8[%c0_32, %c0_33] : memref<8x72xf32, #tpu.memory_space<vmem>>, vector<8x72xf32>
    %c0_34 = arith.constant 0 : index
    %c0_35 = arith.constant 0 : index
    %92 = vector.load %arg9[%c0_34, %c0_35] : memref<8x1xf32, #tpu.memory_space<vmem>>, vector<8x1xf32>
    %cst_36 = arith.constant 0.000000e+00 : f32
    %93 = vector.broadcast %cst_36 : f32 to vector<8x128xf32>
    %94 = tpu.concatenate %93, %90, %93 in 1 : vector<8x128xf32>, vector<8x256xf32>, vector<8x128xf32> -> vector<8x512xf32>
    %95 = vector.extract_strided_slice %94 {offsets = [0, 111], sizes = [8, 256], strides = [1, 1]} : vector<8x512xf32> to vector<8x256xf32>
    %96 = vector.broadcast %1 : vector<1x256xf32> to vector<8x256xf32>
    %97 = arith.mulf %95, %96 : vector<8x256xf32>
    %98 = vector.extract_strided_slice %94 {offsets = [0, 112], sizes = [8, 256], strides = [1, 1]} : vector<8x512xf32> to vector<8x256xf32>
    %99 = vector.extract_strided_slice %94 {offsets = [0, 113], sizes = [8, 256], strides = [1, 1]} : vector<8x512xf32> to vector<8x256xf32>
    %100 = vector.broadcast %2 : vector<1x256xf32> to vector<8x256xf32>
    %101 = arith.mulf %99, %100 : vector<8x256xf32>
    %102 = vector.extract_strided_slice %94 {offsets = [0, 127], sizes = [8, 256], strides = [1, 1]} : vector<8x512xf32> to vector<8x256xf32>
    %103 = vector.broadcast %1 : vector<1x256xf32> to vector<8x256xf32>
    %104 = arith.mulf %102, %103 : vector<8x256xf32>
    %105 = vector.extract_strided_slice %94 {offsets = [0, 128], sizes = [8, 256], strides = [1, 1]} : vector<8x512xf32> to vector<8x256xf32>
    %106 = vector.extract_strided_slice %94 {offsets = [0, 129], sizes = [8, 256], strides = [1, 1]} : vector<8x512xf32> to vector<8x256xf32>
    %107 = vector.broadcast %2 : vector<1x256xf32> to vector<8x256xf32>
    %108 = arith.mulf %106, %107 : vector<8x256xf32>
    %109 = vector.extract_strided_slice %94 {offsets = [0, 143], sizes = [8, 256], strides = [1, 1]} : vector<8x512xf32> to vector<8x256xf32>
    %110 = vector.broadcast %1 : vector<1x256xf32> to vector<8x256xf32>
    %111 = arith.mulf %109, %110 : vector<8x256xf32>
    %112 = vector.extract_strided_slice %94 {offsets = [0, 144], sizes = [8, 256], strides = [1, 1]} : vector<8x512xf32> to vector<8x256xf32>
    %113 = vector.extract_strided_slice %94 {offsets = [0, 145], sizes = [8, 256], strides = [1, 1]} : vector<8x512xf32> to vector<8x256xf32>
    %114 = vector.broadcast %2 : vector<1x256xf32> to vector<8x256xf32>
    %115 = arith.mulf %113, %114 : vector<8x256xf32>
    %116 = tpu.concatenate %97, %98, %101, %104, %105, %108, %111, %112, %115 in 0 : vector<8x256xf32>, vector<8x256xf32>, vector<8x256xf32>, vector<8x256xf32>, vector<8x256xf32>, vector<8x256xf32>, vector<8x256xf32>, vector<8x256xf32>, vector<8x256xf32> -> vector<72x256xf32>
    %cst_37 = arith.constant dense<0.000000e+00> : vector<8x256xf32>
    %117 = tpu.matmul %91, %116, %cst_37 {dimension_numbers = #tpu.dot_dimension_numbers<[1], [0], [0], [1], [0, 0, 1, 1], [], []>} : vector<8x72xf32>, vector<72x256xf32>, vector<8x256xf32> -> vector<8x256xf32>
    %118 = vector.broadcast %92 : vector<8x1xf32> to vector<8x256xf32>
    %119 = arith.addf %117, %118 : vector<8x256xf32>
    %c0_38 = arith.constant 0 : index
    %c0_39 = arith.constant 0 : index
    %c0_40 = arith.constant 0 : index
    %120 = vector.load %arg10[%c0_38, %c0_39, %c0_40] : memref<1x8x256xf32, #tpu.memory_space<vmem>>, vector<1x8x256xf32>
    %121 = vector.shape_cast %120 : vector<1x8x256xf32> to vector<8x256xf32>
    %122 = vector.shape_cast %119 : vector<8x256xf32> to vector<1x8x256xf32>
    tpu.vector_store %arg10[%c0_38, %c0_39, %c0_40], %122 {strides = array<i32>} : memref<1x8x256xf32, #tpu.memory_space<vmem>>, vector<1x8x256xf32>,
    return
  }
  func.func @transform_0(%arg0: i32) -> (i32, i32, i32) {
    %c0_i32 = arith.constant 0 : i32
    %c0_i32_0 = arith.constant 0 : i32
    %c0_i32_1 = arith.constant 0 : i32
    return %arg0, %c0_i32, %c0_i32_0 : i32, i32, i32
  }
  func.func @transform_1(%arg0: i32) -> (i32, i32) {
    %c0_i32 = arith.constant 0 : i32
    %c0_i32_0 = arith.constant 0 : i32
    %c0_i32_1 = arith.constant 0 : i32
    return %c0_i32, %c0_i32_0 : i32, i32
  }
  func.func @transform_2(%arg0: i32) -> (i32, i32) {
    %c0_i32 = arith.constant 0 : i32
    %c0_i32_0 = arith.constant 0 : i32
    %c0_i32_1 = arith.constant 0 : i32
    return %c0_i32, %c0_i32_0 : i32, i32
  }
  func.func @transform_3(%arg0: i32) -> (i32, i32) {
    %c0_i32 = arith.constant 0 : i32
    %c0_i32_0 = arith.constant 0 : i32
    %c0_i32_1 = arith.constant 0 : i32
    return %c0_i32, %c0_i32_0 : i32, i32
  }
  func.func @transform_4(%arg0: i32) -> (i32, i32) {
    %c0_i32 = arith.constant 0 : i32
    %c0_i32_0 = arith.constant 0 : i32
    %c0_i32_1 = arith.constant 0 : i32
    return %c0_i32, %c0_i32_0 : i32, i32
  }
  func.func @transform_5(%arg0: i32) -> (i32, i32) {
    %c0_i32 = arith.constant 0 : i32
    %c0_i32_0 = arith.constant 0 : i32
    %c0_i32_1 = arith.constant 0 : i32
    return %c0_i32, %c0_i32_0 : i32, i32
  }
  func.func @transform_6(%arg0: i32) -> (i32, i32) {
    %c0_i32 = arith.constant 0 : i32
    %c0_i32_0 = arith.constant 0 : i32
    %c0_i32_1 = arith.constant 0 : i32
    return %c0_i32, %c0_i32_0 : i32, i32
  }
  func.func @transform_7(%arg0: i32) -> (i32, i32) {
    %c0_i32 = arith.constant 0 : i32
    %c0_i32_0 = arith.constant 0 : i32
    %c0_i32_1 = arith.constant 0 : i32
    return %c0_i32, %c0_i32_0 : i32, i32
  }
  func.func @transform_8(%arg0: i32) -> (i32, i32) {
    %c0_i32 = arith.constant 0 : i32
    %c0_i32_0 = arith.constant 0 : i32
    %c0_i32_1 = arith.constant 0 : i32
    return %c0_i32, %c0_i32_0 : i32, i32
  }
  func.func @transform_9(%arg0: i32) -> (i32, i32, i32) {
    %c0_i32 = arith.constant 0 : i32
    %c0_i32_0 = arith.constant 0 : i32
    %c0_i32_1 = arith.constant 0 : i32
    return %arg0, %c0_i32, %c0_i32_0 : i32, i32, i32
  }
}

</mosaic_0001>

<llo_original>
// kernel: tpu_custom_call.1
$region0: #{tpu_custom_call.1}
  #allocation0 [shape = 'u32[]', space=smem, size = 0x4, offset = 0x4, fixed_abs, tag = 'smem constant byte address 0x4 - core index']
  #allocation1 [shape = 'u32[144,128]{1,0:T(1,128)}', space=vmem, size = 0x12000, scoped, tag = 'internal scratch']
  %s0 = inlined_call_operand.vmem [shape: f32[2,4,256], index: 0, kind: input, shape index: {}]
  %s1 = inlined_call_operand.hbm [shape: f32[2,256], index: 1, kind: input, shape index: {}]
  %s2 = inlined_call_operand.vmem [shape: f32[8,36], index: 2, kind: input, shape index: {}]
  %s3 = inlined_call_operand.vmem [shape: f32[8,1], index: 3, kind: input, shape index: {}]
  %s4 = inlined_call_operand.vmem [shape: f32[8,8], index: 4, kind: input, shape index: {}]
  %s5 = inlined_call_operand.vmem [shape: f32[8,1], index: 5, kind: input, shape index: {}]
  %s6 = inlined_call_operand.vmem [shape: f32[8,1], index: 6, kind: input, shape index: {}]
  %s7 = inlined_call_operand.vmem [shape: f32[8,72], index: 7, kind: input, shape index: {}]
  %s8 = inlined_call_operand.vmem [shape: f32[8,1], index: 8, kind: input, shape index: {}]
  %s9 = inlined_call_operand.hbm [shape: f32[2,8,256], index: 9, kind: output, shape index: {}]
  %s10 = sld [smem:[#allocation0]]
  $region73: #{tpu_custom_call.1} parent=0
    _
  %s12 = ssub.s32 1, %s10
  %s13 = scalar_select 0, %s12, %s10
  $region1: #{tpu_custom_call.1} parent=0
    #allocation2 [shape = 'u8[2048]{0}', space=vmem, size = 0x800, scoped, tag = 'input window, operand 1, single buffered']
    #allocation3 [shape = 's32[2]{0}', space=sflag, size = 0x8, scoped, tag = 'scoped memory for tpu_custom_call.1']
    #allocation4 [shape = 's32[2]{0}', space=sflag, size = 0x8, scoped, tag = 'scoped memory for tpu_custom_call.1']
    #allocation5 [shape = 'u8[16384]{0}', space=vmem, size = 0x4000, scoped, tag = 'output window, operand 0']
    %14 = vsyncpa [#allocation3], 0
    %15 = vsyncpa [#allocation4], 0
    %s16 = scalar_lea.sflag [#allocation4], 1
    %17 = vsyncpa %s16, 0
    loop: start=0, step=1, limit=4
    $region2: #{tpu_custom_call.1} parent=1 // loop_pre_header
      _
    $region3: #{tpu_custom_call.1} parent=1 // loop_header
      %s19 = sphi 0, %s23
      %p20 = scmp.ge.s32.totalorder %s19, 4
      %s29 = sphi 0, %s31
      %s32 = sphi 0, %s29
      %s33 = sphi 0, %s32
      %s49 = sphi 0, %s33
      %s53 = sphi 0, %s53
      %s55 = sphi 0, %s53
      %s56 = sphi 0, %s55
      %s70 = sphi 0, %s56
      %s74 = sphi 0, %s74
      %s76 = sphi 0, %s74
      %s77 = sphi 0, %s76
      %s91 = sphi 0, %s77
      %s95 = sphi 0, %s95
      %s97 = sphi 0, %s95
      %s98 = sphi 0, %s97
      %s112 = sphi 0, %s98
      %s116 = sphi 0, %s116
      %s118 = sphi 0, %s116
      %s119 = sphi 0, %s118
      %s133 = sphi 0, %s119
      %s137 = sphi 0, %s137
      %s139 = sphi 0, %s137
      %s140 = sphi 0, %s139
      %s154 = sphi 0, %s140
      %s158 = sphi 0, %s158
      %s160 = sphi 0, %s158
      %s161 = sphi 0, %s160
      %s175 = sphi 0, %s161
      %s179 = sphi 0, %s179
      %s181 = sphi 0, %s179
      %s182 = sphi 0, %s181
      %s196 = sphi 0, %s182
      %s200 = sphi 0, %s200
      %s202 = sphi 0, %s200
      %s203 = sphi 0, %s202
      %s217 = sphi 0, %s203
      %s223 = sphi 0, %s225
      %s226 = sphi 0, %s223
      %s227 = sphi 0, %s226
      %s243 = sphi 0, %s227
    $region4: #{tpu_custom_call.1} parent=1 // loop_header_branch
      %22 = sbr.rel (%p20) target = $region8
    $region5: #{tpu_custom_call.1} parent=1 // loop_body
      %s24 = ssub.s32 %s19, 1
      %s25 = ssub.s32 %s19, 2
      %s26 = sadd.s32 %s19, 1
      %s27 = ssub.s32 %s19, %s26
      %p28 = scmp.eq.s32.totalorder %s27, 0
      %s30 = sadd.s32 %s29, 1
      %s31 = scalar_select %p28, %s29, %s30
      %p34 = pneg %p28
      %p35 = scmp.eq.s32.totalorder %s19, 1
      %p36 = por %p34, %p35
      %p37 = scmp.ne.s32.totalorder %s29, %s32
      %p38 = scmp.eq.s32.totalorder %s19, 0
      %p39 = por %p37, %p38
      %p40 = scmp.ne.s32.totalorder %s29, %s32
      %p41 = scmp.eq.s32.totalorder %s24, 1
      %p42 = por %p40, %p41
      %p43 = scmp.ne.s32.totalorder %s32, %s33
      %p44 = scmp.eq.s32.totalorder %s24, 0
      %p45 = por %p43, %p44
      %p46 = scmp.ne.s32.totalorder %s32, %s33
      %p47 = scmp.eq.s32.totalorder %s25, 1
      %p48 = por %p46, %p47
      %p50 = scmp.ne.s32.totalorder %s33, %s49
      %p51 = scmp.eq.s32.totalorder %s25, 0
      %p52 = por %p50, %p51
      %s54 = sadd.s32 %s53, 1
      %p57 = scmp.eq.s32.totalorder %s19, 1
      %p58 = scmp.ne.s32.totalorder %s53, %s55
      %p59 = scmp.eq.s32.totalorder %s19, 0
      %p60 = por %p58, %p59
      %p61 = scmp.ne.s32.totalorder %s53, %s55
      %p62 = scmp.eq.s32.totalorder %s24, 1
      %p63 = por %p61, %p62
      %p64 = scmp.ne.s32.totalorder %s55, %s56
      %p65 = scmp.eq.s32.totalorder %s24, 0
      %p66 = por %p64, %p65
      %p67 = scmp.ne.s32.totalorder %s55, %s56
      %p68 = scmp.eq.s32.totalorder %s25, 1
      %p69 = por %p67, %p68
      %p71 = scmp.ne.s32.totalorder %s56, %s70
      %p72 = scmp.eq.s32.totalorder %s25, 0
      %p73 = por %p71, %p72
      %s75 = sadd.s32 %s74, 1
      %p78 = scmp.eq.s32.totalorder %s19, 1
      %p79 = scmp.ne.s32.totalorder %s74, %s76
      %p80 = scmp.eq.s32.totalorder %s19, 0
      %p81 = por %p79, %p80
      %p82 = scmp.ne.s32.totalorder %s74, %s76
      %p83 = scmp.eq.s32.totalorder %s24, 1
      %p84 = por %p82, %p83
      %p85 = scmp.ne.s32.totalorder %s76, %s77
      %p86 = scmp.eq.s32.totalorder %s24, 0
      %p87 = por %p85, %p86
      %p88 = scmp.ne.s32.totalorder %s76, %s77
      %p89 = scmp.eq.s32.totalorder %s25, 1
      %p90 = por %p88, %p89
      %p92 = scmp.ne.s32.totalorder %s77, %s91
      %p93 = scmp.eq.s32.totalorder %s25, 0
      %p94 = por %p92, %p93
      %s96 = sadd.s32 %s95, 1
      %p99 = scmp.eq.s32.totalorder %s19, 1
      %p100 = scmp.ne.s32.totalorder %s95, %s97
      %p101 = scmp.eq.s32.totalorder %s19, 0
      %p102 = por %p100, %p101
      %p103 = scmp.ne.s32.totalorder %s95, %s97
      %p104 = scmp.eq.s32.totalorder %s24, 1
      %p105 = por %p103, %p104
      %p106 = scmp.ne.s32.totalorder %s97, %s98
      %p107 = scmp.eq.s32.totalorder %s24, 0
      %p108 = por %p106, %p107
      %p109 = scmp.ne.s32.totalorder %s97, %s98
      %p110 = scmp.eq.s32.totalorder %s25, 1
      %p111 = por %p109, %p110
      %p113 = scmp.ne.s32.totalorder %s98, %s112
      %p114 = scmp.eq.s32.totalorder %s25, 0
      %p115 = por %p113, %p114
      %s117 = sadd.s32 %s116, 1
      %p120 = scmp.eq.s32.totalorder %s19, 1
      %p121 = scmp.ne.s32.totalorder %s116, %s118
      %p122 = scmp.eq.s32.totalorder %s19, 0
      %p123 = por %p121, %p122
      %p124 = scmp.ne.s32.totalorder %s116, %s118
      %p125 = scmp.eq.s32.totalorder %s24, 1
      %p126 = por %p124, %p125
      %p127 = scmp.ne.s32.totalorder %s118, %s119
      %p128 = scmp.eq.s32.totalorder %s24, 0
      %p129 = por %p127, %p128
      %p130 = scmp.ne.s32.totalorder %s118, %s119
      %p131 = scmp.eq.s32.totalorder %s25, 1
      %p132 = por %p130, %p131
      %p134 = scmp.ne.s32.totalorder %s119, %s133
      %p135 = scmp.eq.s32.totalorder %s25, 0
      %p136 = por %p134, %p135
      %s138 = sadd.s32 %s137, 1
      %p141 = scmp.eq.s32.totalorder %s19, 1
      %p142 = scmp.ne.s32.totalorder %s137, %s139
      %p143 = scmp.eq.s32.totalorder %s19, 0
      %p144 = por %p142, %p143
      %p145 = scmp.ne.s32.totalorder %s137, %s139
      %p146 = scmp.eq.s32.totalorder %s24, 1
      %p147 = por %p145, %p146
      %p148 = scmp.ne.s32.totalorder %s139, %s140
      %p149 = scmp.eq.s32.totalorder %s24, 0
      %p150 = por %p148, %p149
      %p151 = scmp.ne.s32.totalorder %s139, %s140
      %p152 = scmp.eq.s32.totalorder %s25, 1
      %p153 = por %p151, %p152
      %p155 = scmp.ne.s32.totalorder %s140, %s154
      %p156 = scmp.eq.s32.totalorder %s25, 0
      %p157 = por %p155, %p156
      %s159 = sadd.s32 %s158, 1
      %p162 = scmp.eq.s32.totalorder %s19, 1
      %p163 = scmp.ne.s32.totalorder %s158, %s160
      %p164 = scmp.eq.s32.totalorder %s19, 0
      %p165 = por %p163, %p164
      %p166 = scmp.ne.s32.totalorder %s158, %s160
      %p167 = scmp.eq.s32.totalorder %s24, 1
      %p168 = por %p166, %p167
      %p169 = scmp.ne.s32.totalorder %s160, %s161
      %p170 = scmp.eq.s32.totalorder %s24, 0
      %p171 = por %p169, %p170
      %p172 = scmp.ne.s32.totalorder %s160, %s161
      %p173 = scmp.eq.s32.totalorder %s25, 1
      %p174 = por %p172, %p173
      %p176 = scmp.ne.s32.totalorder %s161, %s175
      %p177 = scmp.eq.s32.totalorder %s25, 0
      %p178 = por %p176, %p177
      %s180 = sadd.s32 %s179, 1
      %p183 = scmp.eq.s32.totalorder %s19, 1
      %p184 = scmp.ne.s32.totalorder %s179, %s181
      %p185 = scmp.eq.s32.totalorder %s19, 0
      %p186 = por %p184, %p185
      %p187 = scmp.ne.s32.totalorder %s179, %s181
      %p188 = scmp.eq.s32.totalorder %s24, 1
      %p189 = por %p187, %p188
      %p190 = scmp.ne.s32.totalorder %s181, %s182
      %p191 = scmp.eq.s32.totalorder %s24, 0
      %p192 = por %p190, %p191
      %p193 = scmp.ne.s32.totalorder %s181, %s182
      %p194 = scmp.eq.s32.totalorder %s25, 1
      %p195 = por %p193, %p194
      %p197 = scmp.ne.s32.totalorder %s182, %s196
      %p198 = scmp.eq.s32.totalorder %s25, 0
      %p199 = por %p197, %p198
      %s201 = sadd.s32 %s200, 1
      %p204 = scmp.eq.s32.totalorder %s19, 1
      %p205 = scmp.ne.s32.totalorder %s200, %s202
      %p206 = scmp.eq.s32.totalorder %s19, 0
      %p207 = por %p205, %p206
      %p208 = scmp.ne.s32.totalorder %s200, %s202
      %p209 = scmp.eq.s32.totalorder %s24, 1
      %p210 = por %p208, %p209
      %p211 = scmp.ne.s32.totalorder %s202, %s203
      %p212 = scmp.eq.s32.totalorder %s24, 0
      %p213 = por %p211, %p212
      %p214 = scmp.ne.s32.totalorder %s202, %s203
      %p215 = scmp.eq.s32.totalorder %s25, 1
      %p216 = por %p214, %p215
      %p218 = scmp.ne.s32.totalorder %s203, %s217
      %p219 = scmp.eq.s32.totalorder %s25, 0
      %p220 = por %p218, %p219
      %s221 = ssub.s32 %s19, %s26
      %p222 = scmp.eq.s32.totalorder %s221, 0
      %s224 = sadd.s32 %s223, 1
      %s225 = scalar_select %p222, %s223, %s224
      %p228 = pneg %p222
      %p229 = scmp.eq.s32.totalorder %s19, 1
      %p230 = por %p228, %p229
      %p231 = scmp.ne.s32.totalorder %s223, %s226
      %p232 = scmp.eq.s32.totalorder %s19, 0
      %p233 = por %p231, %p232
      %p234 = scmp.ne.s32.totalorder %s223, %s226
      %p235 = scmp.eq.s32.totalorder %s24, 1
      %p236 = por %p234, %p235
      %p237 = scmp.ne.s32.totalorder %s226, %s227
      %p238 = scmp.eq.s32.totalorder %s24, 0
      %p239 = por %p237, %p238
      %p240 = scmp.ne.s32.totalorder %s226, %s227
      %p241 = scmp.eq.s32.totalorder %s25, 1
      %p242 = por %p240, %p241
      %p244 = scmp.ne.s32.totalorder %s227, %s243
      %p245 = scmp.eq.s32.totalorder %s25, 0
      %p246 = por %p244, %p245
      %p247 = scmp.le.s32.totalorder 1, %s19
      %p248 = scmp.lt.s32.totalorder %s19, 3
      %p249 = pnand %p247, %p248
      %p250 = pneg %p249
      // Predicated region
      $region9: #{tpu_custom_call.1} parent=5 // pred_check
        _
      $region10: #{tpu_custom_call.1} parent=5 // pred_check_branch
        %252 = sbr.rel (%p249) target = $region12
      $region11: #{tpu_custom_call.1} parent=5 // pred_region
        %s253 = ssub.s32 %s19, 1
        // Predicated region
        $region13: #{tpu_custom_call.1} parent=11 // pred_check
          %p254 = pneg %p66
        $region14: #{tpu_custom_call.1} parent=11 // pred_check_branch
          %256 = sbr.rel (%p254) target = $region16
        $region15: #{tpu_custom_call.1} parent=11 // pred_region
          %s258 = ssub.s32 64, 64
          %259 = vsyncadd [#allocation3], %s258
          %s261 = sshll.u32 [#allocation2], 4
          %s262 = int_to_ptr.vmem [resolvable:$true] %s261
          %264 = dma.hbm_to_vmem [thread:$0]  %s1, 64, %s262, [#allocation3]
        $region16: #{tpu_custom_call.1} parent=11 // pred_fallthru
          _
        // Predicated region
        $region17: #{tpu_custom_call.1} parent=11 // pred_check
          %p265 = pneg %p87
        $region18: #{tpu_custom_call.1} parent=11 // pred_check_branch
          %267 = sbr.rel (%p265) target = $region20
        $region19: #{tpu_custom_call.1} parent=11 // pred_region
          _
        $region20: #{tpu_custom_call.1} parent=11 // pred_fallthru
          _
        // Predicated region
        $region21: #{tpu_custom_call.1} parent=11 // pred_check
          %p268 = pneg %p108
        $region22: #{tpu_custom_call.1} parent=11 // pred_check_branch
          %270 = sbr.rel (%p268) target = $region24
        $region23: #{tpu_custom_call.1} parent=11 // pred_region
          _
        $region24: #{tpu_custom_call.1} parent=11 // pred_fallthru
          _
        // Predicated region
        $region25: #{tpu_custom_call.1} parent=11 // pred_check
          %p271 = pneg %p129
        $region26: #{tpu_custom_call.1} parent=11 // pred_check_branch
          %273 = sbr.rel (%p271) target = $region28
        $region27: #{tpu_custom_call.1} parent=11 // pred_region
          _
        $region28: #{tpu_custom_call.1} parent=11 // pred_fallthru
          _
        // Predicated region
        $region29: #{tpu_custom_call.1} parent=11 // pred_check
          %p274 = pneg %p150
        $region30: #{tpu_custom_call.1} parent=11 // pred_check_branch
          %276 = sbr.rel (%p274) target = $region32
        $region31: #{tpu_custom_call.1} parent=11 // pred_region
          _
        $region32: #{tpu_custom_call.1} parent=11 // pred_fallthru
          _
        // Predicated region
        $region33: #{tpu_custom_call.1} parent=11 // pred_check
          %p277 = pneg %p171
        $region34: #{tpu_custom_call.1} parent=11 // pred_check_branch
          %279 = sbr.rel (%p277) target = $region36
        $region35: #{tpu_custom_call.1} parent=11 // pred_region
          _
        $region36: #{tpu_custom_call.1} parent=11 // pred_fallthru
          _
        // Predicated region
        $region37: #{tpu_custom_call.1} parent=11 // pred_check
          %p280 = pneg %p192
        $region38: #{tpu_custom_call.1} parent=11 // pred_check_branch
          %282 = sbr.rel (%p280) target = $region40
        $region39: #{tpu_custom_call.1} parent=11 // pred_region
          _
        $region40: #{tpu_custom_call.1} parent=11 // pred_fallthru
          _
        // Predicated region
        $region41: #{tpu_custom_call.1} parent=11 // pred_check
          %p283 = pneg %p213
        $region42: #{tpu_custom_call.1} parent=11 // pred_check_branch
          %285 = sbr.rel (%p283) target = $region44
        $region43: #{tpu_custom_call.1} parent=11 // pred_region
          _
        $region44: #{tpu_custom_call.1} parent=11 // pred_fallthru
          _
      $region12: #{tpu_custom_call.1} parent=5 // pred_fallthru
        _
      %p286 = scmp.lt.s32.totalorder %s19, 2
      // Predicated region
      $region45: #{tpu_custom_call.1} parent=5 // pred_check
        %p287 = pneg %p286
      $region46: #{tpu_custom_call.1} parent=5 // pred_check_branch
        %289 = sbr.rel (%p287) target = $region48
      $region47: #{tpu_custom_call.1} parent=5 // pred_region
        // Predicated region
        $region49: #{tpu_custom_call.1} parent=47 // pred_check
          %p290 = pneg %p39
        $region50: #{tpu_custom_call.1} parent=47 // pred_check_branch
          %292 = sbr.rel (%p290) target = $region52
        $region51: #{tpu_custom_call.1} parent=47 // pred_region
          %p293 = scmp.lt.s32.totalorder %s19, 1
          %s294 = scalar_select %p293, %s19, 1
          %s295 = smul.addr %s294, 2
          %s296 = smul.addr %s295, 4
          %s297 = scalar_lea.vmem %s0, %s296
        $region52: #{tpu_custom_call.1} parent=47 // pred_fallthru
          _
      $region48: #{tpu_custom_call.1} parent=5 // pred_fallthru
        _
      %p298 = scmp.le.s32.totalorder 1, %s19
      %p299 = scmp.lt.s32.totalorder %s19, 3
      %p300 = pnand %p298, %p299
      %p301 = pneg %p300
      // Predicated region
      $region53: #{tpu_custom_call.1} parent=5 // pred_check
        _
      $region54: #{tpu_custom_call.1} parent=5 // pred_check_branch
        %303 = sbr.rel (%p300) target = $region56
      $region55: #{tpu_custom_call.1} parent=5 // pred_region
        %s304 = ssub.s32 %s19, 1
        // Predicated region
        $region57: #{tpu_custom_call.1} parent=55 // pred_check
          %p305 = pneg %p66
        $region58: #{tpu_custom_call.1} parent=55 // pred_check_branch
          %307 = sbr.rel (%p305) target = $region60
        $region59: #{tpu_custom_call.1} parent=55 // pred_region
          %308 = dma.done [#allocation3], 64
        $region60: #{tpu_custom_call.1} parent=55 // pred_fallthru
          _
        %p309 = scmp.lt.s32.totalorder %s24, 1
        %s310 = scalar_select %p309, %s24, 1
        %s311 = smul.addr %s310, 2
        %s312 = smul.addr %s311, 4
        %s313 = scalar_lea.vmem %s0, %s312
        %p314 = pneg %p45
        %p315 = pneg %p42
        %p316 = pneg %p66
        %p317 = pneg %p63
        %p318 = pneg %p87
        %p319 = pneg %p84
        %p320 = pneg %p108
        %p321 = pneg %p105
        %p322 = pneg %p129
        %p323 = pneg %p126
        %p324 = pneg %p150
        %p325 = pneg %p147
        %p326 = pneg %p171
        %p327 = pneg %p168
        %p328 = pneg %p192
        %p329 = pneg %p189
        %p330 = pneg %p213
        %p331 = pneg %p210
        %p332 = pneg %p239
        %p333 = pneg %p236
        %s334 = sand.u32 %s226, 1
        %s335 = scalar_lea.sflag [#allocation4], %s334
        %s336 = sand.u32 %s226, 1
        %s337 = smul.addr %s336, 16
        %s338 = scalar_lea.vmem [#allocation5], %s337
        %p339 = scmp.lt.s32.totalorder %s24, 1
        %s340 = scalar_select %p339, %s24, 1
        %s341 = smul.addr %s340, 2
        %s342 = smul.addr %s341, 4
        %s343 = scalar_lea.vmem %s0, %s342
        %v344 = vld [vmem:[#allocation2] sm:$0xf]
        %v345 = vld [vmem:[%s343] sm:$0xff]
        %v346 = vld [vmem:[%s2] sm:$0xff]
        %v347 = vld [vmem:[%s3] sm:$0xff]
        %v349 = vcombine.high %v345, %v345
        %v352 = vlaneseq
        %v353 = vshrl.u32 %v352, 7
        %v354 = vsub.s32 0, %v353
        %v355 = vrot.slane %v344, %v354
        %v356 = vlaneseq
        %v357 = vshrl.u32 %v356, 7
        %v358 = vsub.s32 2, %v357
        %v359 = vrot.slane %v344, %v358
        %v362 = vlaneseq
        %v363 = vshrl.u32 %v362, 7
        %v364 = vsub.s32 0, %v363
        %v365 = vrot.slane %v355, %v364
        %v366 = vlaneseq
        %v367 = vshrl.u32 %v366, 7
        %v368 = vsub.s32 0, %v367
        %v369 = vrot.slane %v359, %v368
        %372 = vrot.lane.b32.xlu0 %v365, 111
        %v373 = vpop.permute.xlu0 %372
        %374 = vrot.lane.b32.xlu0 %v369, 111
        %v375 = vpop.permute.xlu0 %374
        %vm376 = vcmask 908288
        %v377 = vsel %vm376, %v373, %v375
        %v381 = vmul.f32 %v373, 0.0
        %v382 = vmul.f32 %v345, %v377
        %v383 = vmul.f32 %v349, %v375
        %v384 = vlaneseq
        %v385 = vshrl.u32 %v384, 7
        %v386 = vsub.s32 1, %v385
        %v387 = vrot.slane %v344, %v386
        %v388 = vlaneseq
        %v389 = vshrl.u32 %v388, 7
        %v390 = vsub.s32 3, %v389
        %v391 = vrot.slane %v344, %v390
        %v394 = vlaneseq
        %v395 = vshrl.u32 %v394, 7
        %v396 = vsub.s32 1, %v395
        %v397 = vrot.slane %v387, %v396
        %v398 = vlaneseq
        %v399 = vshrl.u32 %v398, 7
        %v400 = vsub.s32 1, %v399
        %v401 = vrot.slane %v391, %v400
        %404 = vrot.lane.b32.xlu0 %v397, 113
        %v405 = vpop.permute.xlu0 %404
        %406 = vrot.lane.b32.xlu0 %v401, 113
        %v407 = vpop.permute.xlu0 %406
        %vm408 = vcmask 924672
        %v409 = vsel %vm408, %v405, %v407
        %v413 = vmul.f32 %v405, 0.0
        %v414 = vmul.f32 %v345, %v409
        %v415 = vmul.f32 %v349, %v407
        %416 = vrot.lane.b32.xlu0 %v365, 127
        %v417 = vpop.permute.xlu0 %416
        %418 = vrot.lane.b32.xlu0 %v369, 127
        %v419 = vpop.permute.xlu0 %418
        %vm420 = vcmask 1039360
        %v421 = vsel %vm420, %v417, %v419
        %v425 = vmul.f32 %v417, 0.0
        %v426 = vmul.f32 %v345, %v421
        %v427 = vmul.f32 %v349, %v419
        %428 = vrot.lane.b32.xlu0 %v397, 1
        %v429 = vpop.permute.xlu0 %428
        %430 = vrot.lane.b32.xlu0 %v401, 1
        %v431 = vpop.permute.xlu0 %430
        %vm432 = vcmask 7168
        %v433 = vsel %vm432, %v429, %v431
        %v437 = vmul.f32 %v345, %v429
        %v438 = vmul.f32 %v349, %v433
        %v439 = vmul.f32 %v431, 0.0
        %440 = vrot.lane.b32.xlu0 %v365, 15
        %v441 = vpop.permute.xlu0 %440
        %442 = vrot.lane.b32.xlu0 %v369, 15
        %v443 = vpop.permute.xlu0 %442
        %vm444 = vcmask 121856
        %v445 = vsel %vm444, %v441, %v443
        %v449 = vmul.f32 %v345, %v441
        %v450 = vmul.f32 %v349, %v445
        %v451 = vmul.f32 %v443, 0.0
        %452 = vrot.lane.b32.xlu0 %v397, 17
        %v453 = vpop.permute.xlu0 %452
        %454 = vrot.lane.b32.xlu0 %v401, 17
        %v455 = vpop.permute.xlu0 %454
        %vm456 = vcmask 138240
        %v457 = vsel %vm456, %v453, %v455
        %v461 = vmul.f32 %v345, %v453
        %v462 = vmul.f32 %v349, %v457
        %v463 = vmul.f32 %v455, 0.0
        %465 = vrot.lane.b32.xlu0 %v346, 124
        %v466 = vpop.permute.xlu0 %465
        %468 = vrot.lane.b32.xlu0 0.0, 16
        %v469 = vpop.permute.xlu0 %468
        %470 = vrot.lane.b32.xlu0 %v345, 16
        %v471 = vpop.permute.xlu0 %470
        %472 = vrot.lane.b32.xlu0 %v349, 16
        %v473 = vpop.permute.xlu0 %472
        %vm474 = vcmask 130048
        %v475 = vsel %vm474, %v469, %v471
        %v476 = vsel %vm474, %v471, %v473
        %vm477 = vcmask 31744
        %v478 = vsel %vm477, %v466, 0
        %vm480 = vcmask 1043456
        %v481 = vsel %vm480, %v475, 0
        %v483 = vsel %vm480, %v476, 0
        %485 = vmatprep.subr.mxu0 %v483
        %486 = vmatpush1.msra.mxu0 %v481
        %487 = vmatprep.subr.mxu0 0.0
        %488 = vmatpush1.msra.mxu0 0.0
        %489 = vmatprep.subr.mxu0 0.0
        %490 = vmatpush1.msra.mxu0 0.0
        %491 = vmatprep.subr.mxu0 0.0
        %492 = vmatpush1.msra.mxu0 0.0
        %493 = vmatprep.subr.mxu0 0.0
        %494 = vmatpush1.msra.mxu0 0.0
        %495 = vmatprep.subr.mxu0 0.0
        %496 = vmatpush1.msra.mxu0 0.0
        %497 = vmatprep.subr.mxu0 0.0
        %498 = vmatpush1.msra.mxu0 0.0
        %499 = vmatprep.subr.mxu0 0.0
        %500 = vmatpush1.msra.mxu0 0.0
        %501 = vmatprep.subr.mxu0 0.0
        %502 = vmatpush1.msra.mxu0 0.0
        %503 = vmatprep.subr.mxu0 0.0
        %504 = vmatpush1.msra.mxu0 0.0
        %505 = vmatprep.subr.mxu0 0.0
        %506 = vmatpush1.msra.mxu0 0.0
        %507 = vmatprep.subr.mxu0 0.0
        %508 = vmatpush1.msra.mxu0 0.0
        %509 = vmatprep.subr.mxu0 0.0
        %510 = vmatpush1.msra.mxu0 0.0
        %511 = vmatprep.subr.mxu0 0.0
        %512 = vmatpush1.msra.mxu0 0.0
        %513 = vmatprep.subr.mxu0 0.0
        %514 = vmatpush1.msra.mxu0 0.0
        %515 = vmatprep.subr.mxu0 0.0
        %516 = vmatpush1.msra.mxu0 0.0
        %517 = vmatprep.subr.mxu0 0.0
        %518 = vmatpush1.msra.mxu0 0.0
        %519 = vmatprep.subr.mxu0 0.0
        %520 = vmatpush1.msra.mxu0 0.0
        %521 = vmatprep.subr.mxu0 0.0
        %522 = vmatpush1.msra.mxu0 0.0
        %523 = vmatprep.subr.mxu0 0.0
        %524 = vmatpush1.msra.mxu0 0.0
        %525 = vmatprep.subr.mxu0 0.0
        %526 = vmatpush1.msra.mxu0 0.0
        %527 = vmatprep.subr.mxu0 0.0
        %528 = vmatpush1.msra.mxu0 0.0
        %529 = vmatprep.subr.mxu0 0.0
        %530 = vmatpush1.msra.mxu0 0.0
        %531 = vmatprep.subr.mxu0 0.0
        %532 = vmatpush1.msra.mxu0 0.0
        %533 = vmatprep.subr.mxu0 0.0
        %534 = vmatpush1.msra.mxu0 0.0
        %535 = vmatprep.subr.mxu0 0.0
        %536 = vmatpush1.msra.mxu0 0.0
        %537 = vmatprep.subr.mxu0 0.0
        %538 = vmatpush1.msra.mxu0 0.0
        %539 = vmatprep.subr.mxu0 0.0
        %540 = vmatpush1.msra.mxu0 0.0
        %541 = vmatprep.subr.mxu0 0.0
        %542 = vmatpush1.msra.mxu0 0.0
        %543 = vmatprep.subr.mxu0 0.0
        %544 = vmatpush1.msra.mxu0 0.0
        %545 = vmatprep.subr.mxu0 0.0
        %546 = vmatpush1.msra.mxu0 0.0
        %547 = vmatprep.subr.mxu0 0.0
        %548 = vmatpush1.msra.mxu0 0.0
        %549 = vmatprep.mubr.f32.mxu0 0.0
        %550 = vmatmul.mubr.f32.gmra.mrb[0].mxu0 %v478
        %v551 = vpop.f32.mrb[0].mxu0
        %v552 = vadd.f32 0.0, %v551
        %v553 = vpop.f32.mrb[0].mxu0
        %v554 = vadd.f32 0.0, %v553
        %555 = vdwg.mxu0
        %559 = vrot.lane.b32.xlu0 %v381, 17
        %v560 = vpop.permute.xlu0 %559
        %561 = vrot.lane.b32.xlu0 %v382, 17
        %v562 = vpop.permute.xlu0 %561
        %563 = vrot.lane.b32.xlu0 %v383, 17
        %v564 = vpop.permute.xlu0 %563
        %v565 = vsel %vm456, %v560, %v562
        %v566 = vsel %vm456, %v562, %v564
        %v567 = vsel %vm477, %v346, 0
        %v569 = vsel %vm480, %v565, 0
        %v571 = vsel %vm480, %v566, 0
        %573 = vmatprep.subr.mxu0 %v571
        %574 = vmatpush1.msra.mxu0 %v569
        %575 = vmatprep.subr.mxu0 0.0
        %576 = vmatpush1.msra.mxu0 0.0
        %577 = vmatprep.subr.mxu0 0.0
        %578 = vmatpush1.msra.mxu0 0.0
        %579 = vmatprep.subr.mxu0 0.0
        %580 = vmatpush1.msra.mxu0 0.0
        %581 = vmatprep.subr.mxu0 0.0
        %582 = vmatpush1.msra.mxu0 0.0
        %583 = vmatprep.subr.mxu0 0.0
        %584 = vmatpush1.msra.mxu0 0.0
        %585 = vmatprep.subr.mxu0 0.0
        %586 = vmatpush1.msra.mxu0 0.0
        %587 = vmatprep.subr.mxu0 0.0
        %588 = vmatpush1.msra.mxu0 0.0
        %589 = vmatprep.subr.mxu0 0.0
        %590 = vmatpush1.msra.mxu0 0.0
        %591 = vmatprep.subr.mxu0 0.0
        %592 = vmatpush1.msra.mxu0 0.0
        %593 = vmatprep.subr.mxu0 0.0
        %594 = vmatpush1.msra.mxu0 0.0
        %595 = vmatprep.subr.mxu0 0.0
        %596 = vmatpush1.msra.mxu0 0.0
        %597 = vmatprep.subr.mxu0 0.0
        %598 = vmatpush1.msra.mxu0 0.0
        %599 = vmatprep.subr.mxu0 0.0
        %600 = vmatpush1.msra.mxu0 0.0
        %601 = vmatprep.subr.mxu0 0.0
        %602 = vmatpush1.msra.mxu0 0.0
        %603 = vmatprep.subr.mxu0 0.0
        %604 = vmatpush1.msra.mxu0 0.0
        %605 = vmatprep.subr.mxu0 0.0
        %606 = vmatpush1.msra.mxu0 0.0
        %607 = vmatprep.subr.mxu0 0.0
        %608 = vmatpush1.msra.mxu0 0.0
        %609 = vmatprep.subr.mxu0 0.0
        %610 = vmatpush1.msra.mxu0 0.0
        %611 = vmatprep.subr.mxu0 0.0
        %612 = vmatpush1.msra.mxu0 0.0
        %613 = vmatprep.subr.mxu0 0.0
        %614 = vmatpush1.msra.mxu0 0.0
        %615 = vmatprep.subr.mxu0 0.0
        %616 = vmatpush1.msra.mxu0 0.0
        %617 = vmatprep.subr.mxu0 0.0
        %618 = vmatpush1.msra.mxu0 0.0
        %619 = vmatprep.subr.mxu0 0.0
        %620 = vmatpush1.msra.mxu0 0.0
        %621 = vmatprep.subr.mxu0 0.0
        %622 = vmatpush1.msra.mxu0 0.0
        %623 = vmatprep.subr.mxu0 0.0
        %624 = vmatpush1.msra.mxu0 0.0
        %625 = vmatprep.subr.mxu0 0.0
        %626 = vmatpush1.msra.mxu0 0.0
        %627 = vmatprep.subr.mxu0 0.0
        %628 = vmatpush1.msra.mxu0 0.0
        %629 = vmatprep.subr.mxu0 0.0
        %630 = vmatpush1.msra.mxu0 0.0
        %631 = vmatprep.subr.mxu0 0.0
        %632 = vmatpush1.msra.mxu0 0.0
        %633 = vmatprep.subr.mxu0 0.0
        %634 = vmatpush1.msra.mxu0 0.0
        %635 = vmatprep.subr.mxu0 0.0
        %636 = vmatpush1.msra.mxu0 0.0
        %637 = vmatprep.mubr.f32.mxu0 0.0
        %638 = vmatmul.mubr.f32.gmra.mrb[0].mxu0 %v567
        %v639 = vpop.f32.mrb[0].mxu0
        %v640 = vadd.f32 %v552, %v639
        %v641 = vpop.f32.mrb[0].mxu0
        %v642 = vadd.f32 %v554, %v641
        %643 = vdwg.mxu0
        %644 = vrot.lane.b32.xlu0 %v346, 120
        %v645 = vpop.permute.xlu0 %644
        %649 = vrot.lane.b32.xlu0 %v413, 15
        %v650 = vpop.permute.xlu0 %649
        %651 = vrot.lane.b32.xlu0 %v414, 15
        %v652 = vpop.permute.xlu0 %651
        %653 = vrot.lane.b32.xlu0 %v415, 15
        %v654 = vpop.permute.xlu0 %653
        %v655 = vsel %vm444, %v650, %v652
        %v656 = vsel %vm444, %v652, %v654
        %v657 = vsel %vm477, %v645, 0
        %v659 = vsel %vm480, %v655, 0
        %v661 = vsel %vm480, %v656, 0
        %663 = vmatprep.subr.mxu0 %v661
        %664 = vmatpush1.msra.mxu0 %v659
        %665 = vmatprep.subr.mxu0 0.0
        %666 = vmatpush1.msra.mxu0 0.0
        %667 = vmatprep.subr.mxu0 0.0
        %668 = vmatpush1.msra.mxu0 0.0
        %669 = vmatprep.subr.mxu0 0.0
        %670 = vmatpush1.msra.mxu0 0.0
        %671 = vmatprep.subr.mxu0 0.0
        %672 = vmatpush1.msra.mxu0 0.0
        %673 = vmatprep.subr.mxu0 0.0
        %674 = vmatpush1.msra.mxu0 0.0
        %675 = vmatprep.subr.mxu0 0.0
        %676 = vmatpush1.msra.mxu0 0.0
        %677 = vmatprep.subr.mxu0 0.0
        %678 = vmatpush1.msra.mxu0 0.0
        %679 = vmatprep.subr.mxu0 0.0
        %680 = vmatpush1.msra.mxu0 0.0
        %681 = vmatprep.subr.mxu0 0.0
        %682 = vmatpush1.msra.mxu0 0.0
        %683 = vmatprep.subr.mxu0 0.0
        %684 = vmatpush1.msra.mxu0 0.0
        %685 = vmatprep.subr.mxu0 0.0
        %686 = vmatpush1.msra.mxu0 0.0
        %687 = vmatprep.subr.mxu0 0.0
        %688 = vmatpush1.msra.mxu0 0.0
        %689 = vmatprep.subr.mxu0 0.0
        %690 = vmatpush1.msra.mxu0 0.0
        %691 = vmatprep.subr.mxu0 0.0
        %692 = vmatpush1.msra.mxu0 0.0
        %693 = vmatprep.subr.mxu0 0.0
        %694 = vmatpush1.msra.mxu0 0.0
        %695 = vmatprep.subr.mxu0 0.0
        %696 = vmatpush1.msra.mxu0 0.0
        %697 = vmatprep.subr.mxu0 0.0
        %698 = vmatpush1.msra.mxu0 0.0
        %699 = vmatprep.subr.mxu0 0.0
        %700 = vmatpush1.msra.mxu0 0.0
        %701 = vmatprep.subr.mxu0 0.0
        %702 = vmatpush1.msra.mxu0 0.0
        %703 = vmatprep.subr.mxu0 0.0
        %704 = vmatpush1.msra.mxu0 0.0
        %705 = vmatprep.subr.mxu0 0.0
        %706 = vmatpush1.msra.mxu0 0.0
        %707 = vmatprep.subr.mxu0 0.0
        %708 = vmatpush1.msra.mxu0 0.0
        %709 = vmatprep.subr.mxu0 0.0
        %710 = vmatpush1.msra.mxu0 0.0
        %711 = vmatprep.subr.mxu0 0.0
        %712 = vmatpush1.msra.mxu0 0.0
        %713 = vmatprep.subr.mxu0 0.0
        %714 = vmatpush1.msra.mxu0 0.0
        %715 = vmatprep.subr.mxu0 0.0
        %716 = vmatpush1.msra.mxu0 0.0
        %717 = vmatprep.subr.mxu0 0.0
        %718 = vmatpush1.msra.mxu0 0.0
        %719 = vmatprep.subr.mxu0 0.0
        %720 = vmatpush1.msra.mxu0 0.0
        %721 = vmatprep.subr.mxu0 0.0
        %722 = vmatpush1.msra.mxu0 0.0
        %723 = vmatprep.subr.mxu0 0.0
        %724 = vmatpush1.msra.mxu0 0.0
        %725 = vmatprep.subr.mxu0 0.0
        %726 = vmatpush1.msra.mxu0 0.0
        %727 = vmatprep.mubr.f32.mxu0 0.0
        %728 = vmatmul.mubr.f32.gmra.mrb[0].mxu0 %v657
        %v729 = vpop.f32.mrb[0].mxu0
        %v730 = vadd.f32 0.0, %v729
        %v731 = vpop.f32.mrb[0].mxu0
        %v732 = vadd.f32 0.0, %v731
        %733 = vdwg.mxu0
        %v734 = vadd.f32 %v640, %v730
        %v735 = vadd.f32 %v642, %v732
        %736 = vrot.lane.b32.xlu0 %v346, 116
        %v737 = vpop.permute.xlu0 %736
        %741 = vrot.lane.b32.xlu0 %v425, 1
        %v742 = vpop.permute.xlu0 %741
        %743 = vrot.lane.b32.xlu0 %v426, 1
        %v744 = vpop.permute.xlu0 %743
        %745 = vrot.lane.b32.xlu0 %v427, 1
        %v746 = vpop.permute.xlu0 %745
        %v747 = vsel %vm432, %v742, %v744
        %v748 = vsel %vm432, %v744, %v746
        %v749 = vsel %vm477, %v737, 0
        %v751 = vsel %vm480, %v747, 0
        %v753 = vsel %vm480, %v748, 0
        %755 = vmatprep.subr.mxu0 %v753
        %756 = vmatpush1.msra.mxu0 %v751
        %757 = vmatprep.subr.mxu0 0.0
        %758 = vmatpush1.msra.mxu0 0.0
        %759 = vmatprep.subr.mxu0 0.0
        %760 = vmatpush1.msra.mxu0 0.0
        %761 = vmatprep.subr.mxu0 0.0
        %762 = vmatpush1.msra.mxu0 0.0
        %763 = vmatprep.subr.mxu0 0.0
        %764 = vmatpush1.msra.mxu0 0.0
        %765 = vmatprep.subr.mxu0 0.0
        %766 = vmatpush1.msra.mxu0 0.0
        %767 = vmatprep.subr.mxu0 0.0
        %768 = vmatpush1.msra.mxu0 0.0
        %769 = vmatprep.subr.mxu0 0.0
        %770 = vmatpush1.msra.mxu0 0.0
        %771 = vmatprep.subr.mxu0 0.0
        %772 = vmatpush1.msra.mxu0 0.0
        %773 = vmatprep.subr.mxu0 0.0
        %774 = vmatpush1.msra.mxu0 0.0
        %775 = vmatprep.subr.mxu0 0.0
        %776 = vmatpush1.msra.mxu0 0.0
        %777 = vmatprep.subr.mxu0 0.0
        %778 = vmatpush1.msra.mxu0 0.0
        %779 = vmatprep.subr.mxu0 0.0
        %780 = vmatpush1.msra.mxu0 0.0
        %781 = vmatprep.subr.mxu0 0.0
        %782 = vmatpush1.msra.mxu0 0.0
        %783 = vmatprep.subr.mxu0 0.0
        %784 = vmatpush1.msra.mxu0 0.0
        %785 = vmatprep.subr.mxu0 0.0
        %786 = vmatpush1.msra.mxu0 0.0
        %787 = vmatprep.subr.mxu0 0.0
        %788 = vmatpush1.msra.mxu0 0.0
        %789 = vmatprep.subr.mxu0 0.0
        %790 = vmatpush1.msra.mxu0 0.0
        %791 = vmatprep.subr.mxu0 0.0
        %792 = vmatpush1.msra.mxu0 0.0
        %793 = vmatprep.subr.mxu0 0.0
        %794 = vmatpush1.msra.mxu0 0.0
        %795 = vmatprep.subr.mxu0 0.0
        %796 = vmatpush1.msra.mxu0 0.0
        %797 = vmatprep.subr.mxu0 0.0
        %798 = vmatpush1.msra.mxu0 0.0
        %799 = vmatprep.subr.mxu0 0.0
        %800 = vmatpush1.msra.mxu0 0.0
        %801 = vmatprep.subr.mxu0 0.0
        %802 = vmatpush1.msra.mxu0 0.0
        %803 = vmatprep.subr.mxu0 0.0
        %804 = vmatpush1.msra.mxu0 0.0
        %805 = vmatprep.subr.mxu0 0.0
        %806 = vmatpush1.msra.mxu0 0.0
        %807 = vmatprep.subr.mxu0 0.0
        %808 = vmatpush1.msra.mxu0 0.0
        %809 = vmatprep.subr.mxu0 0.0
        %810 = vmatpush1.msra.mxu0 0.0
        %811 = vmatprep.subr.mxu0 0.0
        %812 = vmatpush1.msra.mxu0 0.0
        %813 = vmatprep.subr.mxu0 0.0
        %814 = vmatpush1.msra.mxu0 0.0
        %815 = vmatprep.subr.mxu0 0.0
        %816 = vmatpush1.msra.mxu0 0.0
        %817 = vmatprep.subr.mxu0 0.0
        %818 = vmatpush1.msra.mxu0 0.0
        %819 = vmatprep.mubr.f32.mxu0 0.0
        %820 = vmatmul.mubr.f32.gmra.mrb[0].mxu0 %v749
        %v821 = vpop.f32.mrb[0].mxu0
        %v822 = vadd.f32 0.0, %v821
        %v823 = vpop.f32.mrb[0].mxu0
        %v824 = vadd.f32 0.0, %v823
        %825 = vdwg.mxu0
        %v826 = vadd.f32 %v734, %v822
        %v827 = vadd.f32 %v735, %v824
        %828 = vrot.lane.b32.xlu0 %v346, 112
        %v829 = vpop.permute.xlu0 %828
        %v830 = vsel %vm477, %v829, 0
        %v832 = vsel %vm480, %v345, 0
        %v834 = vsel %vm480, %v349, 0
        %836 = vmatprep.subr.mxu0 %v834
        %837 = vmatpush1.msra.mxu0 %v832
        %838 = vmatprep.subr.mxu0 0.0
        %839 = vmatpush1.msra.mxu0 0.0
        %840 = vmatprep.subr.mxu0 0.0
        %841 = vmatpush1.msra.mxu0 0.0
        %842 = vmatprep.subr.mxu0 0.0
        %843 = vmatpush1.msra.mxu0 0.0
        %844 = vmatprep.subr.mxu0 0.0
        %845 = vmatpush1.msra.mxu0 0.0
        %846 = vmatprep.subr.mxu0 0.0
        %847 = vmatpush1.msra.mxu0 0.0
        %848 = vmatprep.subr.mxu0 0.0
        %849 = vmatpush1.msra.mxu0 0.0
        %850 = vmatprep.subr.mxu0 0.0
        %851 = vmatpush1.msra.mxu0 0.0
        %852 = vmatprep.subr.mxu0 0.0
        %853 = vmatpush1.msra.mxu0 0.0
        %854 = vmatprep.subr.mxu0 0.0
        %855 = vmatpush1.msra.mxu0 0.0
        %856 = vmatprep.subr.mxu0 0.0
        %857 = vmatpush1.msra.mxu0 0.0
        %858 = vmatprep.subr.mxu0 0.0
        %859 = vmatpush1.msra.mxu0 0.0
        %860 = vmatprep.subr.mxu0 0.0
        %861 = vmatpush1.msra.mxu0 0.0
        %862 = vmatprep.subr.mxu0 0.0
        %863 = vmatpush1.msra.mxu0 0.0
        %864 = vmatprep.subr.mxu0 0.0
        %865 = vmatpush1.msra.mxu0 0.0
        %866 = vmatprep.subr.mxu0 0.0
        %867 = vmatpush1.msra.mxu0 0.0
        %868 = vmatprep.subr.mxu0 0.0
        %869 = vmatpush1.msra.mxu0 0.0
        %870 = vmatprep.subr.mxu0 0.0
        %871 = vmatpush1.msra.mxu0 0.0
        %872 = vmatprep.subr.mxu0 0.0
        %873 = vmatpush1.msra.mxu0 0.0
        %874 = vmatprep.subr.mxu0 0.0
        %875 = vmatpush1.msra.mxu0 0.0
        %876 = vmatprep.subr.mxu0 0.0
        %877 = vmatpush1.msra.mxu0 0.0
        %878 = vmatprep.subr.mxu0 0.0
        %879 = vmatpush1.msra.mxu0 0.0
        %880 = vmatprep.subr.mxu0 0.0
        %881 = vmatpush1.msra.mxu0 0.0
        %882 = vmatprep.subr.mxu0 0.0
        %883 = vmatpush1.msra.mxu0 0.0
        %884 = vmatprep.subr.mxu0 0.0
        %885 = vmatpush1.msra.mxu0 0.0
        %886 = vmatprep.subr.mxu0 0.0
        %887 = vmatpush1.msra.mxu0 0.0
        %888 = vmatprep.subr.mxu0 0.0
        %889 = vmatpush1.msra.mxu0 0.0
        %890 = vmatprep.subr.mxu0 0.0
        %891 = vmatpush1.msra.mxu0 0.0
        %892 = vmatprep.subr.mxu0 0.0
        %893 = vmatpush1.msra.mxu0 0.0
        %894 = vmatprep.subr.mxu0 0.0
        %895 = vmatpush1.msra.mxu0 0.0
        %896 = vmatprep.subr.mxu0 0.0
        %897 = vmatpush1.msra.mxu0 0.0
        %898 = vmatprep.subr.mxu0 0.0
        %899 = vmatpush1.msra.mxu0 0.0
        %900 = vmatprep.mubr.f32.mxu0 0.0
        %901 = vmatmul.mubr.f32.gmra.mrb[0].mxu0 %v830
        %v902 = vpop.f32.mrb[0].mxu0
        %v903 = vadd.f32 0.0, %v902
        %v904 = vpop.f32.mrb[0].mxu0
        %v905 = vadd.f32 0.0, %v904
        %906 = vdwg.mxu0
        %v907 = vadd.f32 %v826, %v903
        %v908 = vadd.f32 %v827, %v905
        %909 = vrot.lane.b32.xlu0 %v346, 108
        %v910 = vpop.permute.xlu0 %909
        %914 = vrot.lane.b32.xlu0 %v437, 127
        %v915 = vpop.permute.xlu0 %914
        %916 = vrot.lane.b32.xlu0 %v438, 127
        %v917 = vpop.permute.xlu0 %916
        %918 = vrot.lane.b32.xlu0 %v439, 127
        %v919 = vpop.permute.xlu0 %918
        %v920 = vsel %vm420, %v915, %v917
        %v921 = vsel %vm420, %v917, %v919
        %v922 = vsel %vm477, %v910, 0
        %v924 = vsel %vm480, %v920, 0
        %v926 = vsel %vm480, %v921, 0
        %928 = vmatprep.subr.mxu0 %v926
        %929 = vmatpush1.msra.mxu0 %v924
        %930 = vmatprep.subr.mxu0 0.0
        %931 = vmatpush1.msra.mxu0 0.0
        %932 = vmatprep.subr.mxu0 0.0
        %933 = vmatpush1.msra.mxu0 0.0
        %934 = vmatprep.subr.mxu0 0.0
        %935 = vmatpush1.msra.mxu0 0.0
        %936 = vmatprep.subr.mxu0 0.0
        %937 = vmatpush1.msra.mxu0 0.0
        %938 = vmatprep.subr.mxu0 0.0
        %939 = vmatpush1.msra.mxu0 0.0
        %940 = vmatprep.subr.mxu0 0.0
        %941 = vmatpush1.msra.mxu0 0.0
        %942 = vmatprep.subr.mxu0 0.0
        %943 = vmatpush1.msra.mxu0 0.0
        %944 = vmatprep.subr.mxu0 0.0
        %945 = vmatpush1.msra.mxu0 0.0
        %946 = vmatprep.subr.mxu0 0.0
        %947 = vmatpush1.msra.mxu0 0.0
        %948 = vmatprep.subr.mxu0 0.0
        %949 = vmatpush1.msra.mxu0 0.0
        %950 = vmatprep.subr.mxu0 0.0
        %951 = vmatpush1.msra.mxu0 0.0
        %952 = vmatprep.subr.mxu0 0.0
        %953 = vmatpush1.msra.mxu0 0.0
        %954 = vmatprep.subr.mxu0 0.0
        %955 = vmatpush1.msra.mxu0 0.0
        %956 = vmatprep.subr.mxu0 0.0
        %957 = vmatpush1.msra.mxu0 0.0
        %958 = vmatprep.subr.mxu0 0.0
        %959 = vmatpush1.msra.mxu0 0.0
        %960 = vmatprep.subr.mxu0 0.0
        %961 = vmatpush1.msra.mxu0 0.0
        %962 = vmatprep.subr.mxu0 0.0
        %963 = vmatpush1.msra.mxu0 0.0
        %964 = vmatprep.subr.mxu0 0.0
        %965 = vmatpush1.msra.mxu0 0.0
        %966 = vmatprep.subr.mxu0 0.0
        %967 = vmatpush1.msra.mxu0 0.0
        %968 = vmatprep.subr.mxu0 0.0
        %969 = vmatpush1.msra.mxu0 0.0
        %970 = vmatprep.subr.mxu0 0.0
        %971 = vmatpush1.msra.mxu0 0.0
        %972 = vmatprep.subr.mxu0 0.0
        %973 = vmatpush1.msra.mxu0 0.0
        %974 = vmatprep.subr.mxu0 0.0
        %975 = vmatpush1.msra.mxu0 0.0
        %976 = vmatprep.subr.mxu0 0.0
        %977 = vmatpush1.msra.mxu0 0.0
        %978 = vmatprep.subr.mxu0 0.0
        %979 = vmatpush1.msra.mxu0 0.0
        %980 = vmatprep.subr.mxu0 0.0
        %981 = vmatpush1.msra.mxu0 0.0
        %982 = vmatprep.subr.mxu0 0.0
        %983 = vmatpush1.msra.mxu0 0.0
        %984 = vmatprep.subr.mxu0 0.0
        %985 = vmatpush1.msra.mxu0 0.0
        %986 = vmatprep.subr.mxu0 0.0
        %987 = vmatpush1.msra.mxu0 0.0
        %988 = vmatprep.subr.mxu0 0.0
        %989 = vmatpush1.msra.mxu0 0.0
        %990 = vmatprep.subr.mxu0 0.0
        %991 = vmatpush1.msra.mxu0 0.0
        %992 = vmatprep.mubr.f32.mxu0 0.0
        %993 = vmatmul.mubr.f32.gmra.mrb[0].mxu0 %v922
        %v994 = vpop.f32.mrb[0].mxu0
        %v995 = vadd.f32 0.0, %v994
        %v996 = vpop.f32.mrb[0].mxu0
        %v997 = vadd.f32 0.0, %v996
        %998 = vdwg.mxu0
        %v999 = vadd.f32 %v907, %v995
        %v1000 = vadd.f32 %v908, %v997
        %1001 = vrot.lane.b32.xlu0 %v346, 104
        %v1002 = vpop.permute.xlu0 %1001
        %1006 = vrot.lane.b32.xlu0 %v449, 113
        %v1007 = vpop.permute.xlu0 %1006
        %1008 = vrot.lane.b32.xlu0 %v450, 113
        %v1009 = vpop.permute.xlu0 %1008
        %1010 = vrot.lane.b32.xlu0 %v451, 113
        %v1011 = vpop.permute.xlu0 %1010
        %v1012 = vsel %vm408, %v1007, %v1009
        %v1013 = vsel %vm408, %v1009, %v1011
        %v1014 = vsel %vm477, %v1002, 0
        %v1016 = vsel %vm480, %v1012, 0
        %v1018 = vsel %vm480, %v1013, 0
        %1020 = vmatprep.subr.mxu0 %v1018
        %1021 = vmatpush1.msra.mxu0 %v1016
        %1022 = vmatprep.subr.mxu0 0.0
        %1023 = vmatpush1.msra.mxu0 0.0
        %1024 = vmatprep.subr.mxu0 0.0
        %1025 = vmatpush1.msra.mxu0 0.0
        %1026 = vmatprep.subr.mxu0 0.0
        %1027 = vmatpush1.msra.mxu0 0.0
        %1028 = vmatprep.subr.mxu0 0.0
        %1029 = vmatpush1.msra.mxu0 0.0
        %1030 = vmatprep.subr.mxu0 0.0
        %1031 = vmatpush1.msra.mxu0 0.0
        %1032 = vmatprep.subr.mxu0 0.0
        %1033 = vmatpush1.msra.mxu0 0.0
        %1034 = vmatprep.subr.mxu0 0.0
        %1035 = vmatpush1.msra.mxu0 0.0
        %1036 = vmatprep.subr.mxu0 0.0
        %1037 = vmatpush1.msra.mxu0 0.0
        %1038 = vmatprep.subr.mxu0 0.0
        %1039 = vmatpush1.msra.mxu0 0.0
        %1040 = vmatprep.subr.mxu0 0.0
        %1041 = vmatpush1.msra.mxu0 0.0
        %1042 = vmatprep.subr.mxu0 0.0
        %1043 = vmatpush1.msra.mxu0 0.0
        %1044 = vmatprep.subr.mxu0 0.0
        %1045 = vmatpush1.msra.mxu0 0.0
        %1046 = vmatprep.subr.mxu0 0.0
        %1047 = vmatpush1.msra.mxu0 0.0
        %1048 = vmatprep.subr.mxu0 0.0
        %1049 = vmatpush1.msra.mxu0 0.0
        %1050 = vmatprep.subr.mxu0 0.0
        %1051 = vmatpush1.msra.mxu0 0.0
        %1052 = vmatprep.subr.mxu0 0.0
        %1053 = vmatpush1.msra.mxu0 0.0
        %1054 = vmatprep.subr.mxu0 0.0
        %1055 = vmatpush1.msra.mxu0 0.0
        %1056 = vmatprep.subr.mxu0 0.0
        %1057 = vmatpush1.msra.mxu0 0.0
        %1058 = vmatprep.subr.mxu0 0.0
        %1059 = vmatpush1.msra.mxu0 0.0
        %1060 = vmatprep.subr.mxu0 0.0
        %1061 = vmatpush1.msra.mxu0 0.0
        %1062 = vmatprep.subr.mxu0 0.0
        %1063 = vmatpush1.msra.mxu0 0.0
        %1064 = vmatprep.subr.mxu0 0.0
        %1065 = vmatpush1.msra.mxu0 0.0
        %1066 = vmatprep.subr.mxu0 0.0
        %1067 = vmatpush1.msra.mxu0 0.0
        %1068 = vmatprep.subr.mxu0 0.0
        %1069 = vmatpush1.msra.mxu0 0.0
        %1070 = vmatprep.subr.mxu0 0.0
        %1071 = vmatpush1.msra.mxu0 0.0
        %1072 = vmatprep.subr.mxu0 0.0
        %1073 = vmatpush1.msra.mxu0 0.0
        %1074 = vmatprep.subr.mxu0 0.0
        %1075 = vmatpush1.msra.mxu0 0.0
        %1076 = vmatprep.subr.mxu0 0.0
        %1077 = vmatpush1.msra.mxu0 0.0
        %1078 = vmatprep.subr.mxu0 0.0
        %1079 = vmatpush1.msra.mxu0 0.0
        %1080 = vmatprep.subr.mxu0 0.0
        %1081 = vmatpush1.msra.mxu0 0.0
        %1082 = vmatprep.subr.mxu0 0.0
        %1083 = vmatpush1.msra.mxu0 0.0
        %1084 = vmatprep.mubr.f32.mxu0 0.0
        %1085 = vmatmul.mubr.f32.gmra.mrb[0].mxu0 %v1014
        %v1086 = vpop.f32.mrb[0].mxu0
        %v1087 = vadd.f32 0.0, %v1086
        %v1088 = vpop.f32.mrb[0].mxu0
        %v1089 = vadd.f32 0.0, %v1088
        %1090 = vdwg.mxu0
        %v1091 = vadd.f32 %v999, %v1087
        %v1092 = vadd.f32 %v1000, %v1089
        %1093 = vrot.lane.b32.xlu0 %v346, 100
        %v1094 = vpop.permute.xlu0 %1093
        %1095 = vrot.lane.b32.xlu0 %v345, 112
        %v1096 = vpop.permute.xlu0 %1095
        %1097 = vrot.lane.b32.xlu0 %v349, 112
        %v1098 = vpop.permute.xlu0 %1097
        %1099 = vrot.lane.b32.xlu0 0.0, 112
        %v1100 = vpop.permute.xlu0 %1099
        %vm1101 = vcmask 916480
        %v1102 = vsel %vm1101, %v1096, %v1098
        %v1103 = vsel %vm1101, %v1098, %v1100
        %v1104 = vsel %vm477, %v1094, 0
        %v1106 = vsel %vm480, %v1102, 0
        %v1108 = vsel %vm480, %v1103, 0
        %1110 = vmatprep.subr.mxu0 %v1108
        %1111 = vmatpush1.msra.mxu0 %v1106
        %1112 = vmatprep.subr.mxu0 0.0
        %1113 = vmatpush1.msra.mxu0 0.0
        %1114 = vmatprep.subr.mxu0 0.0
        %1115 = vmatpush1.msra.mxu0 0.0
        %1116 = vmatprep.subr.mxu0 0.0
        %1117 = vmatpush1.msra.mxu0 0.0
        %1118 = vmatprep.subr.mxu0 0.0
        %1119 = vmatpush1.msra.mxu0 0.0
        %1120 = vmatprep.subr.mxu0 0.0
        %1121 = vmatpush1.msra.mxu0 0.0
        %1122 = vmatprep.subr.mxu0 0.0
        %1123 = vmatpush1.msra.mxu0 0.0
        %1124 = vmatprep.subr.mxu0 0.0
        %1125 = vmatpush1.msra.mxu0 0.0
        %1126 = vmatprep.subr.mxu0 0.0
        %1127 = vmatpush1.msra.mxu0 0.0
        %1128 = vmatprep.subr.mxu0 0.0
        %1129 = vmatpush1.msra.mxu0 0.0
        %1130 = vmatprep.subr.mxu0 0.0
        %1131 = vmatpush1.msra.mxu0 0.0
        %1132 = vmatprep.subr.mxu0 0.0
        %1133 = vmatpush1.msra.mxu0 0.0
        %1134 = vmatprep.subr.mxu0 0.0
        %1135 = vmatpush1.msra.mxu0 0.0
        %1136 = vmatprep.subr.mxu0 0.0
        %1137 = vmatpush1.msra.mxu0 0.0
        %1138 = vmatprep.subr.mxu0 0.0
        %1139 = vmatpush1.msra.mxu0 0.0
        %1140 = vmatprep.subr.mxu0 0.0
        %1141 = vmatpush1.msra.mxu0 0.0
        %1142 = vmatprep.subr.mxu0 0.0
        %1143 = vmatpush1.msra.mxu0 0.0
        %1144 = vmatprep.subr.mxu0 0.0
        %1145 = vmatpush1.msra.mxu0 0.0
        %1146 = vmatprep.subr.mxu0 0.0
        %1147 = vmatpush1.msra.mxu0 0.0
        %1148 = vmatprep.subr.mxu0 0.0
        %1149 = vmatpush1.msra.mxu0 0.0
        %1150 = vmatprep.subr.mxu0 0.0
        %1151 = vmatpush1.msra.mxu0 0.0
        %1152 = vmatprep.subr.mxu0 0.0
        %1153 = vmatpush1.msra.mxu0 0.0
        %1154 = vmatprep.subr.mxu0 0.0
        %1155 = vmatpush1.msra.mxu0 0.0
        %1156 = vmatprep.subr.mxu0 0.0
        %1157 = vmatpush1.msra.mxu0 0.0
        %1158 = vmatprep.subr.mxu0 0.0
        %1159 = vmatpush1.msra.mxu0 0.0
        %1160 = vmatprep.subr.mxu0 0.0
        %1161 = vmatpush1.msra.mxu0 0.0
        %1162 = vmatprep.subr.mxu0 0.0
        %1163 = vmatpush1.msra.mxu0 0.0
        %1164 = vmatprep.subr.mxu0 0.0
        %1165 = vmatpush1.msra.mxu0 0.0
        %1166 = vmatprep.subr.mxu0 0.0
        %1167 = vmatpush1.msra.mxu0 0.0
        %1168 = vmatprep.subr.mxu0 0.0
        %1169 = vmatpush1.msra.mxu0 0.0
        %1170 = vmatprep.subr.mxu0 0.0
        %1171 = vmatpush1.msra.mxu0 0.0
        %1172 = vmatprep.subr.mxu0 0.0
        %1173 = vmatpush1.msra.mxu0 0.0
        %1174 = vmatprep.mubr.f32.mxu0 0.0
        %1175 = vmatmul.mubr.f32.gmra.mrb[0].mxu0 %v1104
        %v1176 = vpop.f32.mrb[0].mxu0
        %v1177 = vadd.f32 0.0, %v1176
        %v1178 = vpop.f32.mrb[0].mxu0
        %v1179 = vadd.f32 0.0, %v1178
        %1180 = vdwg.mxu0
        %v1181 = vadd.f32 %v1091, %v1177
        %v1182 = vadd.f32 %v1092, %v1179
        %1183 = vrot.lane.b32.xlu0 %v346, 96
        %v1184 = vpop.permute.xlu0 %1183
        %1188 = vrot.lane.b32.xlu0 %v461, 111
        %v1189 = vpop.permute.xlu0 %1188
        %1190 = vrot.lane.b32.xlu0 %v462, 111
        %v1191 = vpop.permute.xlu0 %1190
        %1192 = vrot.lane.b32.xlu0 %v463, 111
        %v1193 = vpop.permute.xlu0 %1192
        %v1194 = vsel %vm376, %v1189, %v1191
        %v1195 = vsel %vm376, %v1191, %v1193
        %v1196 = vsel %vm477, %v1184, 0
        %v1198 = vsel %vm480, %v1194, 0
        %v1200 = vsel %vm480, %v1195, 0
        %1202 = vmatprep.subr.mxu0 %v1200
        %1203 = vmatpush1.msra.mxu0 %v1198
        %1204 = vmatprep.subr.mxu0 0.0
        %1205 = vmatpush1.msra.mxu0 0.0
        %1206 = vmatprep.subr.mxu0 0.0
        %1207 = vmatpush1.msra.mxu0 0.0
        %1208 = vmatprep.subr.mxu0 0.0
        %1209 = vmatpush1.msra.mxu0 0.0
        %1210 = vmatprep.subr.mxu0 0.0
        %1211 = vmatpush1.msra.mxu0 0.0
        %1212 = vmatprep.subr.mxu0 0.0
        %1213 = vmatpush1.msra.mxu0 0.0
        %1214 = vmatprep.subr.mxu0 0.0
        %1215 = vmatpush1.msra.mxu0 0.0
        %1216 = vmatprep.subr.mxu0 0.0
        %1217 = vmatpush1.msra.mxu0 0.0
        %1218 = vmatprep.subr.mxu0 0.0
        %1219 = vmatpush1.msra.mxu0 0.0
        %1220 = vmatprep.subr.mxu0 0.0
        %1221 = vmatpush1.msra.mxu0 0.0
        %1222 = vmatprep.subr.mxu0 0.0
        %1223 = vmatpush1.msra.mxu0 0.0
        %1224 = vmatprep.subr.mxu0 0.0
        %1225 = vmatpush1.msra.mxu0 0.0
        %1226 = vmatprep.subr.mxu0 0.0
        %1227 = vmatpush1.msra.mxu0 0.0
        %1228 = vmatprep.subr.mxu0 0.0
        %1229 = vmatpush1.msra.mxu0 0.0
        %1230 = vmatprep.subr.mxu0 0.0
        %1231 = vmatpush1.msra.mxu0 0.0
        %1232 = vmatprep.subr.mxu0 0.0
        %1233 = vmatpush1.msra.mxu0 0.0
        %1234 = vmatprep.subr.mxu0 0.0
        %1235 = vmatpush1.msra.mxu0 0.0
        %1236 = vmatprep.subr.mxu0 0.0
        %1237 = vmatpush1.msra.mxu0 0.0
        %1238 = vmatprep.subr.mxu0 0.0
        %1239 = vmatpush1.msra.mxu0 0.0
        %1240 = vmatprep.subr.mxu0 0.0
        %1241 = vmatpush1.msra.mxu0 0.0
        %1242 = vmatprep.subr.mxu0 0.0
        %1243 = vmatpush1.msra.mxu0 0.0
        %1244 = vmatprep.subr.mxu0 0.0
        %1245 = vmatpush1.msra.mxu0 0.0
        %1246 = vmatprep.subr.mxu0 0.0
        %1247 = vmatpush1.msra.mxu0 0.0
        %1248 = vmatprep.subr.mxu0 0.0
        %1249 = vmatpush1.msra.mxu0 0.0
        %1250 = vmatprep.subr.mxu0 0.0
        %1251 = vmatpush1.msra.mxu0 0.0
        %1252 = vmatprep.subr.mxu0 0.0
        %1253 = vmatpush1.msra.mxu0 0.0
        %1254 = vmatprep.subr.mxu0 0.0
        %1255 = vmatpush1.msra.mxu0 0.0
        %1256 = vmatprep.subr.mxu0 0.0
        %1257 = vmatpush1.msra.mxu0 0.0
        %1258 = vmatprep.subr.mxu0 0.0
        %1259 = vmatpush1.msra.mxu0 0.0
        %1260 = vmatprep.subr.mxu0 0.0
        %1261 = vmatpush1.msra.mxu0 0.0
        %1262 = vmatprep.subr.mxu0 0.0
        %1263 = vmatpush1.msra.mxu0 0.0
        %1264 = vmatprep.subr.mxu0 0.0
        %1265 = vmatpush1.msra.mxu0 0.0
        %1266 = vmatprep.mubr.f32.mxu0 0.0
        %1267 = vmatmul.mubr.f32.gmra.mrb[0].mxu0 %v1196
        %v1268 = vpop.f32.mrb[0].mxu0
        %v1269 = vadd.f32 0.0, %v1268
        %v1270 = vpop.f32.mrb[0].mxu0
        %v1271 = vadd.f32 0.0, %v1270
        %1272 = vdwg.mxu0
        %v1273 = vadd.f32 %v1181, %v1269
        %v1274 = vadd.f32 %v1182, %v1271
        %1276 = vset.pattern.permute.xlu0 0
        %1277 = vperm.xlu0 %1276, %v347
        %v1278 = vpop.permute.xlu0 %1277
        %v1280 = vadd.f32 %v1273, %v1278
        %v1281 = vadd.f32 %v1274, %v1278
        %v1282 = vld [vmem:[%s4] sm:$0xff]
        %vm1283 = vcmask 64512
        %v1285 = vsel %vm1283, %v1282, 0
        %1287 = vmatprep.subr.mxu0 %v1281
        %1288 = vmatpush1.msra.mxu0 %v1280
        %1289 = vmatprep.subr.mxu0 0.0
        %1290 = vmatpush1.msra.mxu0 0.0
        %1291 = vmatprep.subr.mxu0 0.0
        %1292 = vmatpush1.msra.mxu0 0.0
        %1293 = vmatprep.subr.mxu0 0.0
        %1294 = vmatpush1.msra.mxu0 0.0
        %1295 = vmatprep.subr.mxu0 0.0
        %1296 = vmatpush1.msra.mxu0 0.0
        %1297 = vmatprep.subr.mxu0 0.0
        %1298 = vmatpush1.msra.mxu0 0.0
        %1299 = vmatprep.subr.mxu0 0.0
        %1300 = vmatpush1.msra.mxu0 0.0
        %1301 = vmatprep.subr.mxu0 0.0
        %1302 = vmatpush1.msra.mxu0 0.0
        %1303 = vmatprep.subr.mxu0 0.0
        %1304 = vmatpush1.msra.mxu0 0.0
        %1305 = vmatprep.subr.mxu0 0.0
        %1306 = vmatpush1.msra.mxu0 0.0
        %1307 = vmatprep.subr.mxu0 0.0
        %1308 = vmatpush1.msra.mxu0 0.0
        %1309 = vmatprep.subr.mxu0 0.0
        %1310 = vmatpush1.msra.mxu0 0.0
        %1311 = vmatprep.subr.mxu0 0.0
        %1312 = vmatpush1.msra.mxu0 0.0
        %1313 = vmatprep.subr.mxu0 0.0
        %1314 = vmatpush1.msra.mxu0 0.0
        %1315 = vmatprep.subr.mxu0 0.0
        %1316 = vmatpush1.msra.mxu0 0.0
        %1317 = vmatprep.subr.mxu0 0.0
        %1318 = vmatpush1.msra.mxu0 0.0
        %1319 = vmatprep.subr.mxu0 0.0
        %1320 = vmatpush1.msra.mxu0 0.0
        %1321 = vmatprep.subr.mxu0 0.0
        %1322 = vmatpush1.msra.mxu0 0.0
        %1323 = vmatprep.subr.mxu0 0.0
        %1324 = vmatpush1.msra.mxu0 0.0
        %1325 = vmatprep.subr.mxu0 0.0
        %1326 = vmatpush1.msra.mxu0 0.0
        %1327 = vmatprep.subr.mxu0 0.0
        %1328 = vmatpush1.msra.mxu0 0.0
        %1329 = vmatprep.subr.mxu0 0.0
        %1330 = vmatpush1.msra.mxu0 0.0
        %1331 = vmatprep.subr.mxu0 0.0
        %1332 = vmatpush1.msra.mxu0 0.0
        %1333 = vmatprep.subr.mxu0 0.0
        %1334 = vmatpush1.msra.mxu0 0.0
        %1335 = vmatprep.subr.mxu0 0.0
        %1336 = vmatpush1.msra.mxu0 0.0
        %1337 = vmatprep.subr.mxu0 0.0
        %1338 = vmatpush1.msra.mxu0 0.0
        %1339 = vmatprep.subr.mxu0 0.0
        %1340 = vmatpush1.msra.mxu0 0.0
        %1341 = vmatprep.subr.mxu0 0.0
        %1342 = vmatpush1.msra.mxu0 0.0
        %1343 = vmatprep.subr.mxu0 0.0
        %1344 = vmatpush1.msra.mxu0 0.0
        %1345 = vmatprep.subr.mxu0 0.0
        %1346 = vmatpush1.msra.mxu0 0.0
        %1347 = vmatprep.subr.mxu0 0.0
        %1348 = vmatpush1.msra.mxu0 0.0
        %1349 = vmatprep.subr.mxu0 0.0
        %1350 = vmatpush1.msra.mxu0 0.0
        %1351 = vmatprep.mubr.f32.mxu0 0.0
        %1352 = vmatmul.mubr.f32.gmra.mrb[0].mxu0 %v1285
        %v1353 = vpop.f32.mrb[0].mxu0
        %v1354 = vadd.f32 0.0, %v1353
        %v1355 = vpop.f32.mrb[0].mxu0
        %v1356 = vadd.f32 0.0, %v1355
        %1357 = vdwg.mxu0
        %v1358 = vadd.f32 %v1354, %v1356
        %1359 = vadd.xlane.f32.xlu0 %v1358
        %v1360 = vpop.xlane.xlu0 %1359
        %v1361 = vmul.f32 %v1280, %v1280
        %v1362 = vmul.f32 %v1281, %v1281
        %1363 = vmatprep.subr.mxu0 %v1362
        %1364 = vmatpush1.msra.mxu0 %v1361
        %1365 = vmatprep.subr.mxu0 0.0
        %1366 = vmatpush1.msra.mxu0 0.0
        %1367 = vmatprep.subr.mxu0 0.0
        %1368 = vmatpush1.msra.mxu0 0.0
        %1369 = vmatprep.subr.mxu0 0.0
        %1370 = vmatpush1.msra.mxu0 0.0
        %1371 = vmatprep.subr.mxu0 0.0
        %1372 = vmatpush1.msra.mxu0 0.0
        %1373 = vmatprep.subr.mxu0 0.0
        %1374 = vmatpush1.msra.mxu0 0.0
        %1375 = vmatprep.subr.mxu0 0.0
        %1376 = vmatpush1.msra.mxu0 0.0
        %1377 = vmatprep.subr.mxu0 0.0
        %1378 = vmatpush1.msra.mxu0 0.0
        %1379 = vmatprep.subr.mxu0 0.0
        %1380 = vmatpush1.msra.mxu0 0.0
        %1381 = vmatprep.subr.mxu0 0.0
        %1382 = vmatpush1.msra.mxu0 0.0
        %1383 = vmatprep.subr.mxu0 0.0
        %1384 = vmatpush1.msra.mxu0 0.0
        %1385 = vmatprep.subr.mxu0 0.0
        %1386 = vmatpush1.msra.mxu0 0.0
        %1387 = vmatprep.subr.mxu0 0.0
        %1388 = vmatpush1.msra.mxu0 0.0
        %1389 = vmatprep.subr.mxu0 0.0
        %1390 = vmatpush1.msra.mxu0 0.0
        %1391 = vmatprep.subr.mxu0 0.0
        %1392 = vmatpush1.msra.mxu0 0.0
        %1393 = vmatprep.subr.mxu0 0.0
        %1394 = vmatpush1.msra.mxu0 0.0
        %1395 = vmatprep.subr.mxu0 0.0
        %1396 = vmatpush1.msra.mxu0 0.0
        %1397 = vmatprep.subr.mxu0 0.0
        %1398 = vmatpush1.msra.mxu0 0.0
        %1399 = vmatprep.subr.mxu0 0.0
        %1400 = vmatpush1.msra.mxu0 0.0
        %1401 = vmatprep.subr.mxu0 0.0
        %1402 = vmatpush1.msra.mxu0 0.0
        %1403 = vmatprep.subr.mxu0 0.0
        %1404 = vmatpush1.msra.mxu0 0.0
        %1405 = vmatprep.subr.mxu0 0.0
        %1406 = vmatpush1.msra.mxu0 0.0
        %1407 = vmatprep.subr.mxu0 0.0
        %1408 = vmatpush1.msra.mxu0 0.0
        %1409 = vmatprep.subr.mxu0 0.0
        %1410 = vmatpush1.msra.mxu0 0.0
        %1411 = vmatprep.subr.mxu0 0.0
        %1412 = vmatpush1.msra.mxu0 0.0
        %1413 = vmatprep.subr.mxu0 0.0
        %1414 = vmatpush1.msra.mxu0 0.0
        %1415 = vmatprep.subr.mxu0 0.0
        %1416 = vmatpush1.msra.mxu0 0.0
        %1417 = vmatprep.subr.mxu0 0.0
        %1418 = vmatpush1.msra.mxu0 0.0
        %1419 = vmatprep.subr.mxu0 0.0
        %1420 = vmatpush1.msra.mxu0 0.0
        %1421 = vmatprep.subr.mxu0 0.0
        %1422 = vmatpush1.msra.mxu0 0.0
        %1423 = vmatprep.subr.mxu0 0.0
        %1424 = vmatpush1.msra.mxu0 0.0
        %1425 = vmatprep.subr.mxu0 0.0
        %1426 = vmatpush1.msra.mxu0 0.0
        %1427 = vmatprep.mubr.f32.mxu0 0.0
        %1428 = vmatmul.mubr.f32.gmra.mrb[0].mxu0 %v1285
        %v1429 = vpop.f32.mrb[0].mxu0
        %v1430 = vadd.f32 0.0, %v1429
        %v1431 = vpop.f32.mrb[0].mxu0
        %v1432 = vadd.f32 0.0, %v1431
        %1433 = vdwg.mxu0
        %v1434 = vadd.f32 %v1430, %v1432
        %1435 = vadd.xlane.f32.xlu0 %v1434
        %v1436 = vpop.xlane.xlu0 %1435
        %v1437 = vmul.f32 %v1360, %v1360
        %v1438 = vsub.f32 %v1436, %v1437
        %v1439 = vmax.f32 %v1438, 0.0
        %v1440 = vadd.f32 %v1439, 1e-06
        %v1441 = vrsqrt.pop %v1440
        %v1442 = vld [vmem:[%s5] sm:$0xff]
        %v1443 = vmul.f32 %v1441, %v1442
        %v1444 = vsub.f32 %v1280, %v1360
        %v1445 = vsub.f32 %v1281, %v1360
        %1447 = vset.pattern.permute.xlu0 0
        %1448 = vperm.xlu0 %1447, %v1443
        %v1449 = vpop.permute.xlu0 %1448
        %v1451 = vmul.f32 %v1444, %v1449
        %v1452 = vmul.f32 %v1445, %v1449
        %v1453 = vld [vmem:[%s6] sm:$0xff]
        %1455 = vset.pattern.permute.xlu0 0
        %1456 = vperm.xlu0 %1455, %v1453
        %v1457 = vpop.permute.xlu0 %1456
        %v1459 = vadd.f32 %v1451, %v1457
        %v1460 = vadd.f32 %v1452, %v1457
        %v1461 = vsub.f32 0.0, %v1459
        %v1462 = vsub.f32 0.0, %v1460
        %v1463 = vmul.f32 %v1461, 1.442695
        %v1464 = vpow.pop %v1463
        %v1465 = vmul.f32 %v1462, 1.442695
        %v1466 = vpow.pop %v1465
        %v1467 = vadd.f32 %v1464, 1.0
        %v1468 = vadd.f32 %v1466, 1.0
        %v1469 = vrcp.pop %v1467
        %v1470 = vrcp.pop %v1468
        %v1471 = vmul.f32 %v1459, %v1469
        %v1472 = vmul.f32 %v1460, %v1470
        %v1473 = vld [vmem:[%s7] sm:$0xff]
        %v1474 = vld [vmem:[%s8] sm:$0xff]
        %v1475 = vmul.f32 %v1471, %v377
        %v1476 = vmul.f32 %v1472, %v375
        %v1477 = vmul.f32 %v1471, %v409
        %v1478 = vmul.f32 %v1472, %v407
        %v1479 = vmul.f32 %v1471, %v421
        %v1480 = vmul.f32 %v1472, %v419
        %v1481 = vmul.f32 %v1471, %v429
        %v1482 = vmul.f32 %v1472, %v433
        %v1483 = vmul.f32 %v1471, %v441
        %v1484 = vmul.f32 %v1472, %v445
        %v1485 = vmul.f32 %v1471, %v453
        %v1486 = vmul.f32 %v1472, %v457
        %1489 = vrot.lane.b32.xlu0 0.0, 127
        %v1490 = vpop.permute.xlu0 %1489
        %1491 = vrot.lane.b32.xlu0 %v1471, 127
        %v1492 = vpop.permute.xlu0 %1491
        %1493 = vrot.lane.b32.xlu0 %v1472, 127
        %v1494 = vpop.permute.xlu0 %1493
        %v1495 = vsel %vm420, %v1490, %v1492
        %v1496 = vsel %vm420, %v1492, %v1494
        %1499 = vrot.lane.b32.xlu0 %v413, 126
        %v1500 = vpop.permute.xlu0 %1499
        %1501 = vrot.lane.b32.xlu0 %v1477, 126
        %v1502 = vpop.permute.xlu0 %1501
        %1503 = vrot.lane.b32.xlu0 %v1478, 126
        %v1504 = vpop.permute.xlu0 %1503
        %vm1505 = vcmask 1031168
        %v1506 = vsel %vm1505, %v1500, %v1502
        %v1507 = vsel %vm1505, %v1502, %v1504
        %1510 = vrot.lane.b32.xlu0 %v425, 112
        %v1511 = vpop.permute.xlu0 %1510
        %1512 = vrot.lane.b32.xlu0 %v1479, 112
        %v1513 = vpop.permute.xlu0 %1512
        %1514 = vrot.lane.b32.xlu0 %v1480, 112
        %v1515 = vpop.permute.xlu0 %1514
        %v1516 = vsel %vm1101, %v1511, %v1513
        %v1517 = vsel %vm1101, %v1513, %v1515
        %1518 = vrot.lane.b32.xlu0 %v1471, 111
        %v1519 = vpop.permute.xlu0 %1518
        %1520 = vrot.lane.b32.xlu0 %v1472, 111
        %v1521 = vpop.permute.xlu0 %1520
        %v1522 = vsel %vm376, %v1519, %v1521
        %1525 = vrot.lane.b32.xlu0 %v1481, 110
        %v1526 = vpop.permute.xlu0 %1525
        %1527 = vrot.lane.b32.xlu0 %v1482, 110
        %v1528 = vpop.permute.xlu0 %1527
        %1529 = vrot.lane.b32.xlu0 %v439, 110
        %v1530 = vpop.permute.xlu0 %1529
        %vm1531 = vcmask 900096
        %v1532 = vsel %vm1531, %v1526, %v1528
        %v1533 = vsel %vm1531, %v1528, %v1530
        %1536 = vrot.lane.b32.xlu0 %v1483, 96
        %v1537 = vpop.permute.xlu0 %1536
        %1538 = vrot.lane.b32.xlu0 %v1484, 96
        %v1539 = vpop.permute.xlu0 %1538
        %1540 = vrot.lane.b32.xlu0 %v451, 96
        %v1541 = vpop.permute.xlu0 %1540
        %vm1542 = vcmask 785408
        %v1543 = vsel %vm1542, %v1537, %v1539
        %v1544 = vsel %vm1542, %v1539, %v1541
        %1545 = vrot.lane.b32.xlu0 %v1471, 95
        %v1546 = vpop.permute.xlu0 %1545
        %1547 = vrot.lane.b32.xlu0 %v1472, 95
        %v1548 = vpop.permute.xlu0 %1547
        %1549 = vrot.lane.b32.xlu0 0.0, 95
        %v1550 = vpop.permute.xlu0 %1549
        %vm1551 = vcmask 777216
        %v1552 = vsel %vm1551, %v1546, %v1548
        %v1553 = vsel %vm1551, %v1548, %v1550
        %1556 = vrot.lane.b32.xlu0 %v1485, 94
        %v1557 = vpop.permute.xlu0 %1556
        %1558 = vrot.lane.b32.xlu0 %v1486, 94
        %v1559 = vpop.permute.xlu0 %1558
        %1560 = vrot.lane.b32.xlu0 %v463, 94
        %v1561 = vpop.permute.xlu0 %1560
        %vm1562 = vcmask 769024
        %v1563 = vsel %vm1562, %v1557, %v1559
        %v1564 = vsel %vm1562, %v1559, %v1561
        %1566 = vset.pattern.permute.xlu0 0
        %1567 = vperm.xlu0 %1566, %v1474
        %v1568 = vpop.permute.xlu0 %1567
        %1572 = vrot.lane.b32.xlu0 %v1475, 17
        %v1573 = vpop.permute.xlu0 %1572
        %1574 = vrot.lane.b32.xlu0 %v1476, 17
        %v1575 = vpop.permute.xlu0 %1574
        %1576 = vrot.lane.b32.xlu0 %v1495, 17
        %v1577 = vpop.permute.xlu0 %1576
        %1578 = vrot.lane.b32.xlu0 %v1496, 17
        %v1579 = vpop.permute.xlu0 %1578
        %1580 = vrot.lane.b32.xlu0 %v1494, 17
        %v1581 = vpop.permute.xlu0 %1580
        %1582 = vrot.lane.b32.xlu0 %v1506, 17
        %v1583 = vpop.permute.xlu0 %1582
        %1584 = vrot.lane.b32.xlu0 %v1507, 17
        %v1585 = vpop.permute.xlu0 %1584
        %1586 = vrot.lane.b32.xlu0 %v1504, 17
        %v1587 = vpop.permute.xlu0 %1586
        %1588 = vrot.lane.b32.xlu0 %v1516, 17
        %v1589 = vpop.permute.xlu0 %1588
        %1590 = vrot.lane.b32.xlu0 %v1517, 17
        %v1591 = vpop.permute.xlu0 %1590
        %1592 = vrot.lane.b32.xlu0 %v1515, 17
        %v1593 = vpop.permute.xlu0 %1592
        %1594 = vrot.lane.b32.xlu0 %v1519, 17
        %v1595 = vpop.permute.xlu0 %1594
        %1596 = vrot.lane.b32.xlu0 %v1522, 17
        %v1597 = vpop.permute.xlu0 %1596
        %1598 = vrot.lane.b32.xlu0 %v1521, 17
        %v1599 = vpop.permute.xlu0 %1598
        %1600 = vrot.lane.b32.xlu0 %v1526, 17
        %v1601 = vpop.permute.xlu0 %1600
        %1602 = vrot.lane.b32.xlu0 %v1532, 17
        %v1603 = vpop.permute.xlu0 %1602
        %1604 = vrot.lane.b32.xlu0 %v1533, 17
        %v1605 = vpop.permute.xlu0 %1604
        %1606 = vrot.lane.b32.xlu0 %v1537, 17
        %v1607 = vpop.permute.xlu0 %1606
        %1608 = vrot.lane.b32.xlu0 %v1543, 17
        %v1609 = vpop.permute.xlu0 %1608
        %1610 = vrot.lane.b32.xlu0 %v1544, 17
        %v1611 = vpop.permute.xlu0 %1610
        %1612 = vrot.lane.b32.xlu0 %v1546, 17
        %v1613 = vpop.permute.xlu0 %1612
        %1614 = vrot.lane.b32.xlu0 %v1552, 17
        %v1615 = vpop.permute.xlu0 %1614
        %1616 = vrot.lane.b32.xlu0 %v1553, 17
        %v1617 = vpop.permute.xlu0 %1616
        %1618 = vrot.lane.b32.xlu0 %v1557, 17
        %v1619 = vpop.permute.xlu0 %1618
        %1620 = vrot.lane.b32.xlu0 %v1563, 17
        %v1621 = vpop.permute.xlu0 %1620
        %1622 = vrot.lane.b32.xlu0 %v1564, 17
        %v1623 = vpop.permute.xlu0 %1622
        %v1624 = vsel %vm456, %v560, %v1573
        %v1625 = vsel %vm456, %v1573, %v1575
        %v1626 = vsel %vm456, %v1577, %v1579
        %v1627 = vsel %vm456, %v1579, %v1581
        %v1628 = vsel %vm456, %v1583, %v1585
        %v1629 = vsel %vm456, %v1585, %v1587
        %v1630 = vsel %vm456, %v1589, %v1591
        %v1631 = vsel %vm456, %v1591, %v1593
        %v1632 = vsel %vm456, %v1595, %v1597
        %v1633 = vsel %vm456, %v1597, %v1599
        %v1634 = vsel %vm456, %v1601, %v1603
        %v1635 = vsel %vm456, %v1603, %v1605
        %v1636 = vsel %vm456, %v1607, %v1609
        %v1637 = vsel %vm456, %v1609, %v1611
        %v1638 = vsel %vm456, %v1613, %v1615
        %v1639 = vsel %vm456, %v1615, %v1617
        %v1640 = vsel %vm456, %v1619, %v1621
        %v1641 = vsel %vm456, %v1621, %v1623
        %vm1660 = vcmask 588800
        %v1662 = vsel %vm1660, %v1473, 0
        %1664 = vmatprep.subr.mxu0 %v1625
        %1665 = vmatpush1.msra.mxu0 %v1624
        %1666 = vmatprep.subr.mxu0 %v1627
        %1667 = vmatpush1.msra.mxu0 %v1626
        %1668 = vmatprep.subr.mxu0 %v1629
        %1669 = vmatpush1.msra.mxu0 %v1628
        %1670 = vmatprep.subr.mxu0 %v1631
        %1671 = vmatpush1.msra.mxu0 %v1630
        %1672 = vmatprep.subr.mxu0 %v1633
        %1673 = vmatpush1.msra.mxu0 %v1632
        %1674 = vmatprep.subr.mxu0 %v1635
        %1675 = vmatpush1.msra.mxu0 %v1634
        %1676 = vmatprep.subr.mxu0 %v1637
        %1677 = vmatpush1.msra.mxu0 %v1636
        %1678 = vmatprep.subr.mxu0 %v1639
        %1679 = vmatpush1.msra.mxu0 %v1638
        %1680 = vmatprep.subr.mxu0 %v1641
        %1681 = vmatpush1.msra.mxu0 %v1640
        %1682 = vmatprep.subr.mxu0 0.0
        %1683 = vmatpush1.msra.mxu0 0.0
        %1684 = vmatprep.subr.mxu0 0.0
        %1685 = vmatpush1.msra.mxu0 0.0
        %1686 = vmatprep.subr.mxu0 0.0
        %1687 = vmatpush1.msra.mxu0 0.0
        %1688 = vmatprep.subr.mxu0 0.0
        %1689 = vmatpush1.msra.mxu0 0.0
        %1690 = vmatprep.subr.mxu0 0.0
        %1691 = vmatpush1.msra.mxu0 0.0
        %1692 = vmatprep.subr.mxu0 0.0
        %1693 = vmatpush1.msra.mxu0 0.0
        %1694 = vmatprep.subr.mxu0 0.0
        %1695 = vmatpush1.msra.mxu0 0.0
        %1696 = vmatprep.subr.mxu0 0.0
        %1697 = vmatpush1.msra.mxu0 0.0
        %1698 = vmatprep.subr.mxu0 0.0
        %1699 = vmatpush1.msra.mxu0 0.0
        %1700 = vmatprep.subr.mxu0 0.0
        %1701 = vmatpush1.msra.mxu0 0.0
        %1702 = vmatprep.subr.mxu0 0.0
        %1703 = vmatpush1.msra.mxu0 0.0
        %1704 = vmatprep.subr.mxu0 0.0
        %1705 = vmatpush1.msra.mxu0 0.0
        %1706 = vmatprep.subr.mxu0 0.0
        %1707 = vmatpush1.msra.mxu0 0.0
        %1708 = vmatprep.subr.mxu0 0.0
        %1709 = vmatpush1.msra.mxu0 0.0
        %1710 = vmatprep.subr.mxu0 0.0
        %1711 = vmatpush1.msra.mxu0 0.0
        %1712 = vmatprep.subr.mxu0 0.0
        %1713 = vmatpush1.msra.mxu0 0.0
        %1714 = vmatprep.subr.mxu0 0.0
        %1715 = vmatpush1.msra.mxu0 0.0
        %1716 = vmatprep.subr.mxu0 0.0
        %1717 = vmatpush1.msra.mxu0 0.0
        %1718 = vmatprep.subr.mxu0 0.0
        %1719 = vmatpush1.msra.mxu0 0.0
        %1720 = vmatprep.subr.mxu0 0.0
        %1721 = vmatpush1.msra.mxu0 0.0
        %1722 = vmatprep.subr.mxu0 0.0
        %1723 = vmatpush1.msra.mxu0 0.0
        %1724 = vmatprep.subr.mxu0 0.0
        %1725 = vmatpush1.msra.mxu0 0.0
        %1726 = vmatprep.subr.mxu0 0.0
        %1727 = vmatpush1.msra.mxu0 0.0
        %1728 = vmatprep.mubr.f32.mxu0 0.0
        %1729 = vmatmul.mubr.f32.gmra.mrb[0].mxu0 %v1662
        %v1730 = vpop.f32.mrb[0].mxu0
        %v1731 = vadd.f32 %v1568, %v1730
        %v1732 = vpop.f32.mrb[0].mxu0
        %v1733 = vadd.f32 %v1568, %v1732
        %1734 = vdwg.mxu0
        %1735 = vst [vmem:[%s338] sm:$0xff] %v1731
        %1736 = vst [vmem:[%s338 + $0x8] sm:$0xff] %v1733
        %s1737 = sand.u32 %s226, 1
        %s1738 = scalar_lea.sflag [#allocation4], %s1737
        %s1739 = sand.u32 %s226, 1
        %s1740 = smul.addr %s1739, 16
        %s1741 = scalar_lea.vmem [#allocation5], %s1740
        // Predicated region
        $region61: #{tpu_custom_call.1} parent=55 // pred_check
          %p1742 = pneg %p236
        $region62: #{tpu_custom_call.1} parent=55 // pred_check_branch
          %1744 = sbr.rel (%p1742) target = $region64
        $region63: #{tpu_custom_call.1} parent=55 // pred_region
          %s1746 = ssub.s32 256, 256
          %1747 = vsyncadd %s1738, %s1746
          %s1748 = smul.addr %s24, 2
          %s1749 = smul.addr %s1748, 128
          %s1750 = scalar_lea.hbm %s9, %s1749
          %s1752 = sshll.u32 %s1741, 4
          %s1753 = int_to_ptr.vmem [resolvable:$true] %s1752
          %1755 = dma.vmem_to_hbm [thread:$0]  %s1753, 256, %s1750, %s1738
        $region64: #{tpu_custom_call.1} parent=55 // pred_fallthru
          _
      $region56: #{tpu_custom_call.1} parent=5 // pred_fallthru
        _
      %p1756 = scmp.le.s32.totalorder 2, %s19
      // Predicated region
      $region65: #{tpu_custom_call.1} parent=5 // pred_check
        %p1757 = pneg %p1756
      $region66: #{tpu_custom_call.1} parent=5 // pred_check_branch
        %1759 = sbr.rel (%p1757) target = $region68
      $region67: #{tpu_custom_call.1} parent=5 // pred_region
        %s1760 = ssub.s32 %s19, 2
        // Predicated region
        $region69: #{tpu_custom_call.1} parent=67 // pred_check
          %p1761 = pneg %p242
        $region70: #{tpu_custom_call.1} parent=67 // pred_check_branch
          %1763 = sbr.rel (%p1761) target = $region72
        $region71: #{tpu_custom_call.1} parent=67 // pred_region
          %s1764 = sand.u32 %s227, 1
          %s1765 = scalar_lea.sflag [#allocation4], %s1764
          %s1766 = sand.u32 %s227, 1
          %s1767 = smul.addr %s1766, 16
          %s1768 = scalar_lea.vmem [#allocation5], %s1767
          %1769 = dma.done %s1765, 256
        $region72: #{tpu_custom_call.1} parent=67 // pred_fallthru
          _
      $region68: #{tpu_custom_call.1} parent=5 // pred_fallthru
        _
    $region6: #{tpu_custom_call.1} parent=1 // loop_footer
      %s23 = sadd.s32 1, %s19
    $region7: #{tpu_custom_call.1} parent=1 // loop_footer_branch
      %18 = sbr.rel target = $region3
    $region8: #{tpu_custom_call.1} parent=1 // loop_exit
      _
    %1770 = vsyncpa [#allocation3], 1
    %s1771 = scalar_lea.sflag [#allocation3], 1
    %1772 = vsyncpa %s1771, 1
    %1773 = vsyncpa [#allocation4], 1
    %s1774 = scalar_lea.sflag [#allocation4], 1
    %1775 = vsyncpa %s1774, 1

</llo_original>
